<compile_context>
chip_gen: v6e
topology: v6e:2x2x1
jax: 0.10.0
libtpu: 0.0.40
codegen_flags: <defaults>
</compile_context>

<pallas_src>
import functools

import jax
import jax.numpy as jnp
from jax.experimental import pallas as pl
from jax.experimental.pallas import tpu as pltpu


EPS = 1e-6        # GeM eps
INV_P = 1.0 / 3.0  # GeM 1/p, p = 3 (non-trainable module default)


# ---------------------------------------------------------------------------
# Fused kernel: conv3x3 + SiLU + pointwise head + SiLU + GeM accumulate + FC
# ---------------------------------------------------------------------------
def _fused_trunk_gem_fc_kernel(x_ref, ws_ref, bs_ref, wh_ref, bh_ref,
                               wfc_ref, bfc_ref, pooled_ref, logits_ref,
                               *, tile_h, w, cin, inv_hw):
    i = pl.program_id(1)

    # pooled_ref block is resident across the row-tile axis -> use it as the
    # GeM accumulator (sum over HW of clamp(x, eps)^3 per channel).
    @pl.when(i == 0)
    def _init():
        pooled_ref[...] = jnp.zeros_like(pooled_ref)

    # ---- 3x3 stem conv (stride 1, pad 1) as 9*Cin shifted VPU FMAs (f32) ----
    xb = x_ref[...]                       # [tile_h+2, w+2, cin]   f32
    ws = ws_ref[...]                      # [9*cin, stem_ch]       f32
    s = ws.shape[1]
    conv = jnp.zeros((tile_h, w, s), jnp.float32)
    for dy in range(3):
        for dx in range(3):
            tap = xb[dy:dy + tile_h, dx:dx + w, :]          # [tile_h, w, cin]
            for c in range(cin):
                k = (dy * 3 + dx) * cin + c
                conv = conv + tap[:, :, c:c + 1] * ws[k:k + 1, :]
    h1 = conv + bs_ref[...]               # [tile_h, w, s] + [1, s]
    h1 = h1 * jax.nn.sigmoid(h1)          # SiLU in f32 (v5e-safe)

    # ---- pointwise head projection: bf16 MXU operands, f32 accumulation ----
    m = tile_h * w
    h1m = h1.reshape(m, s)                # lane dim (s) preserved by reshape
    h2 = jnp.dot(h1m.astype(jnp.bfloat16), wh_ref[...],
                 preferred_element_type=jnp.float32)        # [m, C]
    h2 = h2 + bh_ref[...]
    h2 = h2 * jax.nn.sigmoid(h2)          # SiLU in f32

    # ---- GeM partial reduction: sum over this tile's HW rows of clamp^3 ----
    hc = jnp.maximum(h2, EPS)             # x.clamp(min=eps)
    part = jnp.sum(hc * hc * hc, axis=0, keepdims=True)     # [1, C]  (p = 3)
    c_dim = part.shape[1]
    pooled_ref[...] += part.reshape(1, 1, c_dim)

    # ---- finalize at last row tile: mean, pow(1/3), fc as VPU mul+reduce ----
    @pl.when(i == pl.num_programs(1) - 1)
    def _finalize():
        mean = pooled_ref[...] * inv_hw                      # [1, 1, C]
        pooled = jnp.exp(jnp.log(mean) * INV_P)              # mean >= eps^3 > 0
        pooled_ref[...] = pooled
        wfc = wfc_ref[...].reshape(1, 1, c_dim)              # [1, 1, C]
        logit = jnp.sum(pooled * wfc, axis=-1, keepdims=True) + bfc_ref[0]
        logits_ref[...] = logit                              # [1, 1, 1]


def mammo_forward(x_tiles, w_stem, b_stem, w_head, b_head, w_fc_t, b_fc,
                  *, h, w, tile_h):
    """x_tiles: [B, nH, tile_h+2, w+2, cin] row-halo'd padded input tiles."""
    bsz, n_h, thp2, wp2, cin = x_tiles.shape
    s = w_stem.shape[1]
    c = w_head.shape[1]

    kern = functools.partial(_fused_trunk_gem_fc_kernel,
                             tile_h=tile_h, w=w, cin=cin,
                             inv_hw=1.0 / float(h * w))

    pooled, logits = pl.pallas_call(
        kern,
        out_shape=(
            jax.ShapeDtypeStruct((bsz, 1, c), jnp.float32),   # pooled features
            jax.ShapeDtypeStruct((bsz, 1, 1), jnp.float32),   # logits
        ),
        grid=(bsz, n_h),
        in_specs=[
            # halo'd input row tile (leading batch / tile dims squeezed)
            pl.BlockSpec((None, None, thp2, wp2, cin),
                         lambda b, i: (b, i, 0, 0, 0)),
            pl.BlockSpec((9 * cin, s), lambda b, i: (0, 0)),  # w_stem (f32)
            pl.BlockSpec((1, s), lambda b, i: (0, 0)),        # b_stem
            pl.BlockSpec((s, c), lambda b, i: (0, 0)),        # w_head (bf16)
            pl.BlockSpec((1, c), lambda b, i: (0, 0)),        # b_head
            pl.BlockSpec((1, c), lambda b, i: (0, 0)),        # fc weight (row)
            pl.BlockSpec(memory_space=pltpu.MemorySpace.SMEM),  # fc bias scalar
        ],
        out_specs=(
            pl.BlockSpec((1, 1, c), lambda b, i: (b, 0, 0)),
            pl.BlockSpec((1, 1, 1), lambda b, i: (b, 0, 0)),
        ),
        compiler_params=pltpu.CompilerParams(
            dimension_semantics=("parallel", "arbitrary"),
            vmem_limit_bytes=32 * 1024 * 1024),
    )(x_tiles, w_stem, b_stem, w_head, b_head, w_fc_t, b_fc)

    return pooled[:, 0, :], logits[:, 0, :]


# ---------------------------------------------------------------------------
# Model wrapper
# ---------------------------------------------------------------------------
class MammoModelEfficientNetPallas:
    def __init__(self, key, *, in_chans=1, stem_ch=32, n_features=128,
                 tile_h=8, get_features=False):
        self.in_chans = in_chans
        self.stem_ch = stem_ch
        self.n_features = n_features
        self.tile_h = tile_h
        self.get_features = get_features

        k0, k1, k2, k3 = jax.random.split(key, 4)
        # stem 3x3 conv (folded BN), [ky*kx*Cin, stem_ch]; f32 (VPU conv path)
        self.w_stem = jax.random.normal(k0, (9 * in_chans, stem_ch),
                                        jnp.float32) * 0.1
        self.b_stem = jnp.zeros((1, stem_ch), jnp.float32)
        # pointwise head projection (stand-in for the deep trunk); bf16 for MXU
        self.w_head = (jax.random.normal(k1, (stem_ch, n_features),
                                         jnp.float32) * 0.1
                       ).astype(jnp.bfloat16)
        self.b_head = jnp.zeros((1, n_features), jnp.float32)
        # classifier head nn.Linear(n_features, 1), stored transposed [1, C]
        self.w_fc_t = jax.random.normal(k2, (1, n_features), jnp.float32) * 0.05
        self.b_fc = jax.random.normal(k3, (1,), jnp.float32) * 0.01

    @functools.partial(jax.jit, static_argnums=0)
    def __call__(self, x_nchw):
        # x_nchw: [B, in_chans, H, W] (PyTorch NCHW) -> NHWC f32
        x = jnp.transpose(x_nchw, (0, 2, 3, 1)).astype(jnp.float32)
        B, H, W, Cin = x.shape
        tile_h = self.tile_h
        assert H % tile_h == 0, "H must be a multiple of tile_h"
        assert W % 8 == 0, "W should be sublane-aligned for the in-kernel reshape"
        n_h = H // tile_h

        # zero-pad (conv pad=1) and cut row-halo'd tiles: ~1x input HBM traffic
        # (vs 9x for im2col); overhead is only (tile_h+2)/tile_h.
        xp = jnp.pad(x, ((0, 0), (1, 1), (1, 1), (0, 0)))
        tiles = jnp.stack(
            [xp[:, i * tile_h:i * tile_h + tile_h + 2] for i in range(n_h)],
            axis=1)                                   # [B, nH, th+2, W+2, Cin]

        pooled, logits = mammo_forward(
            tiles, self.w_stem, self.b_stem, self.w_head, self.b_head,
            self.w_fc_t, self.b_fc, h=H, w=W, tile_h=tile_h)

        if self.get_features:
            return pooled, logits
        return logits


# ---------------------------------------------------------------------------
# Pure-JAX reference (same stand-in trunk) for a correctness check
# ---------------------------------------------------------------------------
def _reference_forward(model, x_nchw):
    x = jnp.transpose(x_nchw, (0, 2, 3, 1)).astype(jnp.float32)
    B, H, W, Cin = x.shape
    xp = jnp.pad(x, ((0, 0), (1, 1), (1, 1), (0, 0)))
    taps = []
    for dy in range(3):
        for dx in range(3):
            for c in range(Cin):
                taps.append(xp[:, dy:dy + H, dx:dx + W, c])
    patches = jnp.stack(taps, axis=-1)                         # [B,H,W,9*Cin]
    conv = jnp.einsum("bhwk,ks->bhws", patches, model.w_stem,
                      precision=jax.lax.Precision.HIGHEST) + model.b_stem[0]
    h1 = conv * jax.nn.sigmoid(conv)
    h2 = jnp.einsum("bhws,sc->bhwc", h1.astype(jnp.bfloat16), model.w_head,
                    preferred_element_type=jnp.float32) + model.b_head[0]
    h2 = h2 * jax.nn.sigmoid(h2)
    hc = jnp.maximum(h2, EPS)
    mean = jnp.mean(hc ** 3, axis=(1, 2))                      # [B, C]
    pooled = mean ** INV_P
    logits = jnp.sum(pooled * model.w_fc_t, axis=-1, keepdims=True) + model.b_fc[0]
    return pooled, logits


if __name__ == "__main__":
    key = jax.random.PRNGKey(0)
    k_model, k_data = jax.random.split(key)

    model = MammoModelEfficientNetPallas(
        k_model, in_chans=1, stem_ch=32, n_features=128, tile_h=8,
        get_features=True)

    # small shapes: batch=2, in_chans=1 (module default), spatial=16x16
    x = jax.random.normal(k_data, (2, 1, 16, 16), jnp.float32)

    pooled, logits = model(x)
    jax.block_until_ready(logits)

    assert pooled.shape == (2, 128), pooled.shape
    assert logits.shape == (2, 1), logits.shape
    assert bool(jnp.all(jnp.isfinite(pooled)))
    assert bool(jnp.all(jnp.isfinite(logits)))

    pooled_ref, logits_ref = _reference_forward(model, x)
    assert bool(jnp.allclose(pooled, pooled_ref, rtol=1e-2, atol=1e-3))
    assert bool(jnp.allclose(logits, logits_ref, rtol=1e-2, atol=1e-3))

    print("KERNEL_OK")
</pallas_src>

<mosaic_0001>
module attributes {stable_mosaic.version = 11 : i64} {
  func.func @_fused_trunk_gem_fc_kernel(%arg0: i32, %arg1: i32, %arg2: memref<1x1x10x18x1xf32, #tpu.memory_space<vmem>>, %arg3: memref<9x32xf32, #tpu.memory_space<vmem>>, %arg4: memref<1x32xf32, #tpu.memory_space<vmem>>, %arg5: memref<32x128xbf16, #tpu.memory_space<vmem>>, %arg6: memref<1x128xf32, #tpu.memory_space<vmem>>, %arg7: memref<1x128xf32, #tpu.memory_space<vmem>>, %arg8: memref<1xf32, #tpu.memory_space<smem>>, %arg9: memref<1x1x128xf32, #tpu.memory_space<vmem>>, %arg10: memref<1x1x1xf32, #tpu.memory_space<vmem>>) attributes {dimension_semantics = [#tpu.dimension_semantics<parallel>, #tpu.dimension_semantics<arbitrary>], iteration_bounds = array<i64: 2, 2>, scalar_prefetch = 0 : i64, scratch_operands = 0 : i64, tpu.core_type = #tpu.core_type<tc>, window_params = [{transform_indices = @transform_0, window_bounds = array<i64: 1, 1, 10, 18, 1>}, {pipeline_mode = #tpu.pipeline_mode<synchronous>, transform_indices = @transform_1, window_bounds = array<i64: 9, 32>}, {pipeline_mode = #tpu.pipeline_mode<synchronous>, transform_indices = @transform_2, window_bounds = array<i64: 1, 32>}, {pipeline_mode = #tpu.pipeline_mode<synchronous>, transform_indices = @transform_3, window_bounds = array<i64: 32, 128>}, {pipeline_mode = #tpu.pipeline_mode<synchronous>, transform_indices = @transform_4, window_bounds = array<i64: 1, 128>}, {pipeline_mode = #tpu.pipeline_mode<synchronous>, transform_indices = @transform_5, window_bounds = array<i64: 1, 128>}, {transform_indices = @transform_6, window_bounds = array<i64: 1>}, {transform_indices = @transform_7, window_bounds = array<i64: 1, 1, 128>}, {transform_indices = @transform_8, window_bounds = array<i64: 1, 1, 1>}]} {
    %c0_i32 = arith.constant 0 : i32
    %0 = arith.cmpi eq, %arg1, %c0_i32 : i32
    %1 = arith.extui %0 : i1 to i32
    %c0_i32_0 = arith.constant 0 : i32
    %2 = arith.cmpi ne, %1, %c0_i32_0 : i32
    scf.if %2 {
      %cst_25 = arith.constant 0.000000e+00 : f32
      %106 = vector.broadcast %cst_25 : f32 to vector<1x1x128xf32>
      %c0_26 = arith.constant 0 : index
      %c0_27 = arith.constant 0 : index
      %c0_28 = arith.constant 0 : index
      %107 = vector.load %arg9[%c0_26, %c0_27, %c0_28] : memref<1x1x128xf32, #tpu.memory_space<vmem>>, vector<1x1x128xf32>
      tpu.vector_store %arg9[%c0_26, %c0_27, %c0_28], %106 {strides = array<i32>} : memref<1x1x128xf32, #tpu.memory_space<vmem>>, vector<1x1x128xf32>,
    } else {
    }
    %c0 = arith.constant 0 : index
    %c0_1 = arith.constant 0 : index
    %c0_2 = arith.constant 0 : index
    %c0_3 = arith.constant 0 : index
    %c0_4 = arith.constant 0 : index
    %3 = vector.load %arg2[%c0, %c0_1, %c0_2, %c0_3, %c0_4] : memref<1x1x10x18x1xf32, #tpu.memory_space<vmem>>, vector<1x1x10x18x1xf32>
    %4 = vector.shape_cast %3 : vector<1x1x10x18x1xf32> to vector<10x18x1xf32>
    %c0_5 = arith.constant 0 : index
    %c0_6 = arith.constant 0 : index
    %5 = vector.load %arg3[%c0_5, %c0_6] : memref<9x32xf32, #tpu.memory_space<vmem>>, vector<9x32xf32>
    %cst = arith.constant 0.000000e+00 : f32
    %6 = vector.broadcast %cst : f32 to vector<8x16x32xf32>
    %7 = vector.extract_strided_slice %4 {offsets = [0, 0, 0], sizes = [8, 16, 1], strides = [1, 1, 1]} : vector<10x18x1xf32> to vector<8x16x1xf32>
    %8 = vector.extract_strided_slice %5 {offsets = [0, 0], sizes = [1, 32], strides = [1, 1]} : vector<9x32xf32> to vector<1x32xf32>
    %9 = vector.shape_cast %8 : vector<1x32xf32> to vector<1x1x32xf32>
    %10 = vector.broadcast %7 : vector<8x16x1xf32> to vector<8x16x32xf32>
    %11 = vector.broadcast %9 : vector<1x1x32xf32> to vector<8x16x32xf32>
    %12 = arith.mulf %10, %11 : vector<8x16x32xf32>
    %13 = arith.addf %6, %12 : vector<8x16x32xf32>
    %14 = vector.extract_strided_slice %4 {offsets = [0, 1, 0], sizes = [8, 16, 1], strides = [1, 1, 1]} : vector<10x18x1xf32> to vector<8x16x1xf32>
    %15 = vector.extract_strided_slice %5 {offsets = [1, 0], sizes = [1, 32], strides = [1, 1]} : vector<9x32xf32> to vector<1x32xf32>
    %16 = vector.shape_cast %15 : vector<1x32xf32> to vector<1x1x32xf32>
    %17 = vector.broadcast %14 : vector<8x16x1xf32> to vector<8x16x32xf32>
    %18 = vector.broadcast %16 : vector<1x1x32xf32> to vector<8x16x32xf32>
    %19 = arith.mulf %17, %18 : vector<8x16x32xf32>
    %20 = arith.addf %13, %19 : vector<8x16x32xf32>
    %21 = vector.extract_strided_slice %4 {offsets = [0, 2, 0], sizes = [8, 16, 1], strides = [1, 1, 1]} : vector<10x18x1xf32> to vector<8x16x1xf32>
    %22 = vector.extract_strided_slice %5 {offsets = [2, 0], sizes = [1, 32], strides = [1, 1]} : vector<9x32xf32> to vector<1x32xf32>
    %23 = vector.shape_cast %22 : vector<1x32xf32> to vector<1x1x32xf32>
    %24 = vector.broadcast %21 : vector<8x16x1xf32> to vector<8x16x32xf32>
    %25 = vector.broadcast %23 : vector<1x1x32xf32> to vector<8x16x32xf32>
    %26 = arith.mulf %24, %25 : vector<8x16x32xf32>
    %27 = arith.addf %20, %26 : vector<8x16x32xf32>
    %28 = vector.extract_strided_slice %4 {offsets = [1, 0, 0], sizes = [8, 16, 1], strides = [1, 1, 1]} : vector<10x18x1xf32> to vector<8x16x1xf32>
    %29 = vector.extract_strided_slice %5 {offsets = [3, 0], sizes = [1, 32], strides = [1, 1]} : vector<9x32xf32> to vector<1x32xf32>
    %30 = vector.shape_cast %29 : vector<1x32xf32> to vector<1x1x32xf32>
    %31 = vector.broadcast %28 : vector<8x16x1xf32> to vector<8x16x32xf32>
    %32 = vector.broadcast %30 : vector<1x1x32xf32> to vector<8x16x32xf32>
    %33 = arith.mulf %31, %32 : vector<8x16x32xf32>
    %34 = arith.addf %27, %33 : vector<8x16x32xf32>
    %35 = vector.extract_strided_slice %4 {offsets = [1, 1, 0], sizes = [8, 16, 1], strides = [1, 1, 1]} : vector<10x18x1xf32> to vector<8x16x1xf32>
    %36 = vector.extract_strided_slice %5 {offsets = [4, 0], sizes = [1, 32], strides = [1, 1]} : vector<9x32xf32> to vector<1x32xf32>
    %37 = vector.shape_cast %36 : vector<1x32xf32> to vector<1x1x32xf32>
    %38 = vector.broadcast %35 : vector<8x16x1xf32> to vector<8x16x32xf32>
    %39 = vector.broadcast %37 : vector<1x1x32xf32> to vector<8x16x32xf32>
    %40 = arith.mulf %38, %39 : vector<8x16x32xf32>
    %41 = arith.addf %34, %40 : vector<8x16x32xf32>
    %42 = vector.extract_strided_slice %4 {offsets = [1, 2, 0], sizes = [8, 16, 1], strides = [1, 1, 1]} : vector<10x18x1xf32> to vector<8x16x1xf32>
    %43 = vector.extract_strided_slice %5 {offsets = [5, 0], sizes = [1, 32], strides = [1, 1]} : vector<9x32xf32> to vector<1x32xf32>
    %44 = vector.shape_cast %43 : vector<1x32xf32> to vector<1x1x32xf32>
    %45 = vector.broadcast %42 : vector<8x16x1xf32> to vector<8x16x32xf32>
    %46 = vector.broadcast %44 : vector<1x1x32xf32> to vector<8x16x32xf32>
    %47 = arith.mulf %45, %46 : vector<8x16x32xf32>
    %48 = arith.addf %41, %47 : vector<8x16x32xf32>
    %49 = vector.extract_strided_slice %4 {offsets = [2, 0, 0], sizes = [8, 16, 1], strides = [1, 1, 1]} : vector<10x18x1xf32> to vector<8x16x1xf32>
    %50 = vector.extract_strided_slice %5 {offsets = [6, 0], sizes = [1, 32], strides = [1, 1]} : vector<9x32xf32> to vector<1x32xf32>
    %51 = vector.shape_cast %50 : vector<1x32xf32> to vector<1x1x32xf32>
    %52 = vector.broadcast %49 : vector<8x16x1xf32> to vector<8x16x32xf32>
    %53 = vector.broadcast %51 : vector<1x1x32xf32> to vector<8x16x32xf32>
    %54 = arith.mulf %52, %53 : vector<8x16x32xf32>
    %55 = arith.addf %48, %54 : vector<8x16x32xf32>
    %56 = vector.extract_strided_slice %4 {offsets = [2, 1, 0], sizes = [8, 16, 1], strides = [1, 1, 1]} : vector<10x18x1xf32> to vector<8x16x1xf32>
    %57 = vector.extract_strided_slice %5 {offsets = [7, 0], sizes = [1, 32], strides = [1, 1]} : vector<9x32xf32> to vector<1x32xf32>
    %58 = vector.shape_cast %57 : vector<1x32xf32> to vector<1x1x32xf32>
    %59 = vector.broadcast %56 : vector<8x16x1xf32> to vector<8x16x32xf32>
    %60 = vector.broadcast %58 : vector<1x1x32xf32> to vector<8x16x32xf32>
    %61 = arith.mulf %59, %60 : vector<8x16x32xf32>
    %62 = arith.addf %55, %61 : vector<8x16x32xf32>
    %63 = vector.extract_strided_slice %4 {offsets = [2, 2, 0], sizes = [8, 16, 1], strides = [1, 1, 1]} : vector<10x18x1xf32> to vector<8x16x1xf32>
    %64 = vector.extract_strided_slice %5 {offsets = [8, 0], sizes = [1, 32], strides = [1, 1]} : vector<9x32xf32> to vector<1x32xf32>
    %65 = vector.shape_cast %64 : vector<1x32xf32> to vector<1x1x32xf32>
    %66 = vector.broadcast %63 : vector<8x16x1xf32> to vector<8x16x32xf32>
    %67 = vector.broadcast %65 : vector<1x1x32xf32> to vector<8x16x32xf32>
    %68 = arith.mulf %66, %67 : vector<8x16x32xf32>
    %69 = arith.addf %62, %68 : vector<8x16x32xf32>
    %c0_7 = arith.constant 0 : index
    %c0_8 = arith.constant 0 : index
    %70 = vector.load %arg4[%c0_7, %c0_8] : memref<1x32xf32, #tpu.memory_space<vmem>>, vector<1x32xf32>
    %71 = vector.shape_cast %70 : vector<1x32xf32> to vector<1x1x32xf32>
    %72 = vector.broadcast %71 : vector<1x1x32xf32> to vector<8x16x32xf32>
    %73 = arith.addf %69, %72 : vector<8x16x32xf32>
    %74 = arith.negf %73 : vector<8x16x32xf32>
    %75 = math.exp %74 : vector<8x16x32xf32>
    %cst_9 = arith.constant 1.000000e+00 : f32
    %76 = vector.broadcast %cst_9 : f32 to vector<8x16x32xf32>
    %77 = arith.addf %76, %75 : vector<8x16x32xf32>
    %78 = arith.divf %76, %77 : vector<8x16x32xf32>
    %79 = arith.mulf %73, %78 : vector<8x16x32xf32>
    %80 = vector.shape_cast %79 : vector<8x16x32xf32> to vector<128x32xf32>
    %81 = arith.truncf %80 : vector<128x32xf32> to vector<128x32xbf16>
    %c0_10 = arith.constant 0 : index
    %c0_11 = arith.constant 0 : index
    %82 = vector.load %arg5[%c0_10, %c0_11] : memref<32x128xbf16, #tpu.memory_space<vmem>>, vector<32x128xbf16>
    %cst_12 = arith.constant dense<0.000000e+00> : vector<128x128xf32>
    %83 = tpu.matmul %81, %82, %cst_12 {dimension_numbers = #tpu.dot_dimension_numbers<[1], [0], [0], [1], [0, 0, 1, 1], [], []>} : vector<128x32xbf16>, vector<32x128xbf16>, vector<128x128xf32> -> vector<128x128xf32>
    %c0_13 = arith.constant 0 : index
    %c0_14 = arith.constant 0 : index
    %84 = vector.load %arg6[%c0_13, %c0_14] : memref<1x128xf32, #tpu.memory_space<vmem>>, vector<1x128xf32>
    %85 = vector.broadcast %84 : vector<1x128xf32> to vector<128x128xf32>
    %86 = arith.addf %83, %85 : vector<128x128xf32>
    %87 = arith.negf %86 : vector<128x128xf32>
    %88 = math.exp %87 : vector<128x128xf32>
    %cst_15 = arith.constant 1.000000e+00 : f32
    %89 = vector.broadcast %cst_15 : f32 to vector<128x128xf32>
    %90 = arith.addf %89, %88 : vector<128x128xf32>
    %91 = arith.divf %89, %90 : vector<128x128xf32>
    %92 = arith.mulf %86, %91 : vector<128x128xf32>
    %cst_16 = arith.constant 9.99999997E-7 : f32
    %93 = vector.broadcast %cst_16 : f32 to vector<128x128xf32>
    %94 = arith.maximumf %92, %93 : vector<128x128xf32>
    %95 = arith.mulf %94, %94 : vector<128x128xf32>
    %96 = arith.mulf %95, %94 : vector<128x128xf32>
    %cst_17 = arith.constant dense<0.000000e+00> : vector<128xf32>
    %97 = vector.multi_reduction <add>, %96, %cst_17 [0] : vector<128x128xf32> to vector<128xf32>
    %98 = vector.shape_cast %97 : vector<128xf32> to vector<1x128xf32>
    %c0_18 = arith.constant 0 : index
    %c0_19 = arith.constant 0 : index
    %c0_20 = arith.constant 0 : index
    %99 = vector.load %arg9[%c0_18, %c0_19, %c0_20] : memref<1x1x128xf32, #tpu.memory_space<vmem>>, vector<1x1x128xf32>
    %100 = vector.shape_cast %98 : vector<1x128xf32> to vector<1x1x128xf32>
    %101 = arith.addf %99, %100 : vector<1x1x128xf32>
    %c0_21 = arith.constant 0 : index
    %c0_22 = arith.constant 0 : index
    %c0_23 = arith.constant 0 : index
    %102 = vector.load %arg9[%c0_21, %c0_22, %c0_23] : memref<1x1x128xf32, #tpu.memory_space<vmem>>, vector<1x1x128xf32>
    tpu.vector_store %arg9[%c0_21, %c0_22, %c0_23], %101 {strides = array<i32>} : memref<1x1x128xf32, #tpu.memory_space<vmem>>, vector<1x1x128xf32>,
    %c1_i32 = arith.constant 1 : i32
    %103 = arith.cmpi eq, %arg1, %c1_i32 : i32
    %104 = arith.extui %103 : i1 to i32
    %c0_i32_24 = arith.constant 0 : i32
    %105 = arith.cmpi ne, %104, %c0_i32_24 : i32
    scf.if %105 {
      %c0_25 = arith.constant 0 : index
      %c0_26 = arith.constant 0 : index
      %c0_27 = arith.constant 0 : index
      %106 = vector.load %arg9[%c0_25, %c0_26, %c0_27] : memref<1x1x128xf32, #tpu.memory_space<vmem>>, vector<1x1x128xf32>
      %cst_28 = arith.constant 3.906250e-03 : f32
      %107 = vector.broadcast %cst_28 : f32 to vector<1x1x128xf32>
      %108 = arith.mulf %106, %107 : vector<1x1x128xf32>
      %109 = math.log %108 : vector<1x1x128xf32>
      %cst_29 = arith.constant 0.333333343 : f32
      %110 = vector.broadcast %cst_29 : f32 to vector<1x1x128xf32>
      %111 = arith.mulf %109, %110 : vector<1x1x128xf32>
      %112 = math.exp %111 : vector<1x1x128xf32>
      %c0_30 = arith.constant 0 : index
      %c0_31 = arith.constant 0 : index
      %c0_32 = arith.constant 0 : index
      %113 = vector.load %arg9[%c0_30, %c0_31, %c0_32] : memref<1x1x128xf32, #tpu.memory_space<vmem>>, vector<1x1x128xf32>
      tpu.vector_store %arg9[%c0_30, %c0_31, %c0_32], %112 {strides = array<i32>} : memref<1x1x128xf32, #tpu.memory_space<vmem>>, vector<1x1x128xf32>,
      %c0_33 = arith.constant 0 : index
      %c0_34 = arith.constant 0 : index
      %114 = vector.load %arg7[%c0_33, %c0_34] : memref<1x128xf32, #tpu.memory_space<vmem>>, vector<1x128xf32>
      %115 = vector.shape_cast %114 : vector<1x128xf32> to vector<1x1x128xf32>
      %116 = arith.mulf %112, %115 : vector<1x1x128xf32>
      %cst_35 = arith.constant dense<0.000000e+00> : vector<1x1xf32>
      %117 = vector.multi_reduction <add>, %116, %cst_35 [2] : vector<1x1x128xf32> to vector<1x1xf32>
      %118 = vector.shape_cast %117 : vector<1x1xf32> to vector<1x1x1xf32>
      %c0_36 = arith.constant 0 : index
      %119 = memref.load %arg8[%c0_36] : memref<1xf32, #tpu.memory_space<smem>>
      %120 = vector.broadcast %119 : f32 to vector<1x1x1xf32>
      %121 = arith.addf %118, %120 : vector<1x1x1xf32>
      %c0_37 = arith.constant 0 : index
      %c0_38 = arith.constant 0 : index
      %c0_39 = arith.constant 0 : index
      %122 = vector.load %arg10[%c0_37, %c0_38, %c0_39] : memref<1x1x1xf32, #tpu.memory_space<vmem>>, vector<1x1x1xf32>
      tpu.vector_store %arg10[%c0_37, %c0_38, %c0_39], %121 {strides = array<i32>} : memref<1x1x1xf32, #tpu.memory_space<vmem>>, vector<1x1x1xf32>,
    } else {
    }
    return
  }
  func.func @transform_0(%arg0: i32, %arg1: i32) -> (i32, i32, i32, i32, i32) {
    %c0_i32 = arith.constant 0 : i32
    %c0_i32_0 = arith.constant 0 : i32
    %c0_i32_1 = arith.constant 0 : i32
    %c0_i32_2 = arith.constant 0 : i32
    return %arg0, %arg1, %c0_i32, %c0_i32_0, %c0_i32_1 : i32, i32, i32, i32, i32
  }
  func.func @transform_1(%arg0: i32, %arg1: i32) -> (i32, i32) {
    %c0_i32 = arith.constant 0 : i32
    %c0_i32_0 = arith.constant 0 : i32
    %c0_i32_1 = arith.constant 0 : i32
    return %c0_i32, %c0_i32_0 : i32, i32
  }
  func.func @transform_2(%arg0: i32, %arg1: i32) -> (i32, i32) {
    %c0_i32 = arith.constant 0 : i32
    %c0_i32_0 = arith.constant 0 : i32
    %c0_i32_1 = arith.constant 0 : i32
    return %c0_i32, %c0_i32_0 : i32, i32
  }
  func.func @transform_3(%arg0: i32, %arg1: i32) -> (i32, i32) {
    %c0_i32 = arith.constant 0 : i32
    %c0_i32_0 = arith.constant 0 : i32
    %c0_i32_1 = arith.constant 0 : i32
    return %c0_i32, %c0_i32_0 : i32, i32
  }
  func.func @transform_4(%arg0: i32, %arg1: i32) -> (i32, i32) {
    %c0_i32 = arith.constant 0 : i32
    %c0_i32_0 = arith.constant 0 : i32
    %c0_i32_1 = arith.constant 0 : i32
    return %c0_i32, %c0_i32_0 : i32, i32
  }
  func.func @transform_5(%arg0: i32, %arg1: i32) -> (i32, i32) {
    %c0_i32 = arith.constant 0 : i32
    %c0_i32_0 = arith.constant 0 : i32
    %c0_i32_1 = arith.constant 0 : i32
    return %c0_i32, %c0_i32_0 : i32, i32
  }
  func.func @transform_6(%arg0: i32, %arg1: i32) -> i32 {
    %c0_i32 = arith.constant 0 : i32
    %c0_i32_0 = arith.constant 0 : i32
    return %c0_i32 : i32
  }
  func.func @transform_7(%arg0: i32, %arg1: i32) -> (i32, i32, i32) {
    %c0_i32 = arith.constant 0 : i32
    %c0_i32_0 = arith.constant 0 : i32
    %c0_i32_1 = arith.constant 0 : i32
    return %arg0, %c0_i32, %c0_i32_0 : i32, i32, i32
  }
  func.func @transform_8(%arg0: i32, %arg1: i32) -> (i32, i32, i32) {
    %c0_i32 = arith.constant 0 : i32
    %c0_i32_0 = arith.constant 0 : i32
    %c0_i32_1 = arith.constant 0 : i32
    return %arg0, %c0_i32, %c0_i32_0 : i32, i32, i32
  }
}

</mosaic_0001>

<llo_original>
// kernel: a_call__.1
$region0: #{a_call__.1}
  #allocation0 [shape = 'u32[]', space=smem, size = 0x4, offset = 0x4, fixed_abs, tag = 'smem constant byte address 0x4 - core index']
  #allocation1 [shape = 'u32[144,128]{1,0:T(1,128)}', space=vmem, size = 0x12000, scoped, tag = 'internal scratch']
  #allocation2 [shape = 'f32[1]{0:T(128)S(6)}', space=smem, size = 0x200, scoped, tag = 'scoped memory for a_call__.1']
  %s0 = inlined_call_operand.vmem [shape: f32[2,2,10,18,1], index: 0, kind: input, shape index: {}]
  %s1 = inlined_call_operand.vmem [shape: f32[9,32], index: 1, kind: input, shape index: {}]
  %s2 = inlined_call_operand.vmem [shape: f32[1,32], index: 2, kind: input, shape index: {}]
  %s3 = inlined_call_operand.vmem [shape: bf16[32,128], index: 3, kind: input, shape index: {}]
  %s4 = inlined_call_operand.vmem [shape: f32[1,128], index: 4, kind: input, shape index: {}]
  %s5 = inlined_call_operand.vmem [shape: f32[1,128], index: 5, kind: input, shape index: {}]
  %s6 = inlined_call_operand.<no memory space> [shape: f32[1], index: 6, kind: input, shape index: {}]
  %s7 = inlined_call_operand.hbm [shape: f32[2,1,128], index: 7, kind: output, shape index: {0}]
  %s8 = inlined_call_operand.vmem [shape: f32[2,1,1], index: 8, kind: output, shape index: {1}]
  %9 = xla_tuple %s7, %s8
  %s10 = sld [smem:[#allocation0]]
  $region77: #{a_call__.1} parent=0
    _
  %s12 = ssub.s32 1, %s10
  %s13 = scalar_select 0, %s12, %s10
  %14 = sst [smem:[#allocation2]] %s6
  $region1: #{a_call__.1} parent=0
    #allocation3 [shape = 'u8[1024]{0}', space=vmem, size = 0x400, scoped, tag = 'output window, operand 0']
    #allocation4 [shape = 's32[2]{0}', space=sflag, size = 0x8, scoped, tag = 'scoped memory for a_call__.1']
    %15 = vsyncpa [#allocation4], 0
    %s16 = scalar_lea.sflag [#allocation4], 1
    %17 = vsyncpa %s16, 0
    loop: start=0, step=1, limit=6
    $region2: #{a_call__.1} parent=1 // loop_pre_header
      _
    $region3: #{a_call__.1} parent=1 // loop_header
      %s19 = sphi 0, %s23
      %p20 = scmp.ge.s32.totalorder %s19, 6
      %s26 = sphi 0, %s38
      %s27 = sphi 0, %s34
      %s28 = sphi 0, %s26
      %s29 = sphi 0, %s27
      %s30 = sphi 0, %s28
      %s31 = sphi 0, %s29
      %s43 = sphi 0, %s45
      %s46 = sphi 0, %s43
      %s47 = sphi 0, %s46
      %s63 = sphi 0, %s47
      %s67 = sphi 0, %s67
      %s69 = sphi 0, %s67
      %s70 = sphi 0, %s69
      %s84 = sphi 0, %s70
      %s88 = sphi 0, %s88
      %s90 = sphi 0, %s88
      %s91 = sphi 0, %s90
      %s105 = sphi 0, %s91
      %s109 = sphi 0, %s109
      %s111 = sphi 0, %s109
      %s112 = sphi 0, %s111
      %s126 = sphi 0, %s112
      %s130 = sphi 0, %s130
      %s132 = sphi 0, %s130
      %s133 = sphi 0, %s132
      %s147 = sphi 0, %s133
      %s151 = sphi 0, %s151
      %s153 = sphi 0, %s151
      %s154 = sphi 0, %s153
      %s168 = sphi 0, %s154
      %s172 = sphi 0, %s172
      %s174 = sphi 0, %s172
      %s175 = sphi 0, %s174
      %s189 = sphi 0, %s175
      %s195 = sphi 0, %s197
      %s198 = sphi 0, %s195
      %s199 = sphi 0, %s198
      %s215 = sphi 0, %s199
      %s221 = sphi 0, %s223
      %s224 = sphi 0, %s221
      %s225 = sphi 0, %s224
      %s241 = sphi 0, %s225
    $region4: #{a_call__.1} parent=1 // loop_header_branch
      %22 = sbr.rel (%p20) target = $region8
    $region5: #{a_call__.1} parent=1 // loop_body
      %s24 = ssub.s32 %s19, 1
      %s25 = ssub.s32 %s19, 2
      %s32 = sadd.s32 1, %s27
      %p33 = scmp.ge.s32.totalorder %s32, 2
      %s34 = scalar_select %p33, 0, %s32
      %s35 = sadd.s32 1, %s26
      %s36 = scalar_select %p33, %s35, %s26
      %p37 = scmp.ge.s32.totalorder %s36, 2
      %s38 = scalar_select %p37, 0, %s36
      %s39 = ssub.s32 %s26, %s38
      %s40 = ssub.s32 %s27, %s34
      %s41 = sor.u32 %s39, %s40
      %p42 = scmp.eq.s32.totalorder %s41, 0
      %s44 = sadd.s32 %s43, 1
      %s45 = scalar_select %p42, %s43, %s44
      %p48 = pneg %p42
      %p49 = scmp.eq.s32.totalorder %s19, 3
      %p50 = por %p48, %p49
      %p51 = scmp.ne.s32.totalorder %s43, %s46
      %p52 = scmp.eq.s32.totalorder %s19, 0
      %p53 = por %p51, %p52
      %p54 = scmp.ne.s32.totalorder %s43, %s46
      %p55 = scmp.eq.s32.totalorder %s24, 3
      %p56 = por %p54, %p55
      %p57 = scmp.ne.s32.totalorder %s46, %s47
      %p58 = scmp.eq.s32.totalorder %s24, 0
      %p59 = por %p57, %p58
      %p60 = scmp.ne.s32.totalorder %s46, %s47
      %p61 = scmp.eq.s32.totalorder %s25, 3
      %p62 = por %p60, %p61
      %p64 = scmp.ne.s32.totalorder %s47, %s63
      %p65 = scmp.eq.s32.totalorder %s25, 0
      %p66 = por %p64, %p65
      %s68 = sadd.s32 %s67, 1
      %p71 = scmp.eq.s32.totalorder %s19, 3
      %p72 = scmp.ne.s32.totalorder %s67, %s69
      %p73 = scmp.eq.s32.totalorder %s19, 0
      %p74 = por %p72, %p73
      %p75 = scmp.ne.s32.totalorder %s67, %s69
      %p76 = scmp.eq.s32.totalorder %s24, 3
      %p77 = por %p75, %p76
      %p78 = scmp.ne.s32.totalorder %s69, %s70
      %p79 = scmp.eq.s32.totalorder %s24, 0
      %p80 = por %p78, %p79
      %p81 = scmp.ne.s32.totalorder %s69, %s70
      %p82 = scmp.eq.s32.totalorder %s25, 3
      %p83 = por %p81, %p82
      %p85 = scmp.ne.s32.totalorder %s70, %s84
      %p86 = scmp.eq.s32.totalorder %s25, 0
      %p87 = por %p85, %p86
      %s89 = sadd.s32 %s88, 1
      %p92 = scmp.eq.s32.totalorder %s19, 3
      %p93 = scmp.ne.s32.totalorder %s88, %s90
      %p94 = scmp.eq.s32.totalorder %s19, 0
      %p95 = por %p93, %p94
      %p96 = scmp.ne.s32.totalorder %s88, %s90
      %p97 = scmp.eq.s32.totalorder %s24, 3
      %p98 = por %p96, %p97
      %p99 = scmp.ne.s32.totalorder %s90, %s91
      %p100 = scmp.eq.s32.totalorder %s24, 0
      %p101 = por %p99, %p100
      %p102 = scmp.ne.s32.totalorder %s90, %s91
      %p103 = scmp.eq.s32.totalorder %s25, 3
      %p104 = por %p102, %p103
      %p106 = scmp.ne.s32.totalorder %s91, %s105
      %p107 = scmp.eq.s32.totalorder %s25, 0
      %p108 = por %p106, %p107
      %s110 = sadd.s32 %s109, 1
      %p113 = scmp.eq.s32.totalorder %s19, 3
      %p114 = scmp.ne.s32.totalorder %s109, %s111
      %p115 = scmp.eq.s32.totalorder %s19, 0
      %p116 = por %p114, %p115
      %p117 = scmp.ne.s32.totalorder %s109, %s111
      %p118 = scmp.eq.s32.totalorder %s24, 3
      %p119 = por %p117, %p118
      %p120 = scmp.ne.s32.totalorder %s111, %s112
      %p121 = scmp.eq.s32.totalorder %s24, 0
      %p122 = por %p120, %p121
      %p123 = scmp.ne.s32.totalorder %s111, %s112
      %p124 = scmp.eq.s32.totalorder %s25, 3
      %p125 = por %p123, %p124
      %p127 = scmp.ne.s32.totalorder %s112, %s126
      %p128 = scmp.eq.s32.totalorder %s25, 0
      %p129 = por %p127, %p128
      %s131 = sadd.s32 %s130, 1
      %p134 = scmp.eq.s32.totalorder %s19, 3
      %p135 = scmp.ne.s32.totalorder %s130, %s132
      %p136 = scmp.eq.s32.totalorder %s19, 0
      %p137 = por %p135, %p136
      %p138 = scmp.ne.s32.totalorder %s130, %s132
      %p139 = scmp.eq.s32.totalorder %s24, 3
      %p140 = por %p138, %p139
      %p141 = scmp.ne.s32.totalorder %s132, %s133
      %p142 = scmp.eq.s32.totalorder %s24, 0
      %p143 = por %p141, %p142
      %p144 = scmp.ne.s32.totalorder %s132, %s133
      %p145 = scmp.eq.s32.totalorder %s25, 3
      %p146 = por %p144, %p145
      %p148 = scmp.ne.s32.totalorder %s133, %s147
      %p149 = scmp.eq.s32.totalorder %s25, 0
      %p150 = por %p148, %p149
      %s152 = sadd.s32 %s151, 1
      %p155 = scmp.eq.s32.totalorder %s19, 3
      %p156 = scmp.ne.s32.totalorder %s151, %s153
      %p157 = scmp.eq.s32.totalorder %s19, 0
      %p158 = por %p156, %p157
      %p159 = scmp.ne.s32.totalorder %s151, %s153
      %p160 = scmp.eq.s32.totalorder %s24, 3
      %p161 = por %p159, %p160
      %p162 = scmp.ne.s32.totalorder %s153, %s154
      %p163 = scmp.eq.s32.totalorder %s24, 0
      %p164 = por %p162, %p163
      %p165 = scmp.ne.s32.totalorder %s153, %s154
      %p166 = scmp.eq.s32.totalorder %s25, 3
      %p167 = por %p165, %p166
      %p169 = scmp.ne.s32.totalorder %s154, %s168
      %p170 = scmp.eq.s32.totalorder %s25, 0
      %p171 = por %p169, %p170
      %s173 = sadd.s32 %s172, 1
      %p176 = scmp.eq.s32.totalorder %s19, 3
      %p177 = scmp.ne.s32.totalorder %s172, %s174
      %p178 = scmp.eq.s32.totalorder %s19, 0
      %p179 = por %p177, %p178
      %p180 = scmp.ne.s32.totalorder %s172, %s174
      %p181 = scmp.eq.s32.totalorder %s24, 3
      %p182 = por %p180, %p181
      %p183 = scmp.ne.s32.totalorder %s174, %s175
      %p184 = scmp.eq.s32.totalorder %s24, 0
      %p185 = por %p183, %p184
      %p186 = scmp.ne.s32.totalorder %s174, %s175
      %p187 = scmp.eq.s32.totalorder %s25, 3
      %p188 = por %p186, %p187
      %p190 = scmp.ne.s32.totalorder %s175, %s189
      %p191 = scmp.eq.s32.totalorder %s25, 0
      %p192 = por %p190, %p191
      %s193 = ssub.s32 %s26, %s38
      %p194 = scmp.eq.s32.totalorder %s193, 0
      %s196 = sadd.s32 %s195, 1
      %s197 = scalar_select %p194, %s195, %s196
      %p200 = pneg %p194
      %p201 = scmp.eq.s32.totalorder %s19, 3
      %p202 = por %p200, %p201
      %p203 = scmp.ne.s32.totalorder %s195, %s198
      %p204 = scmp.eq.s32.totalorder %s19, 0
      %p205 = por %p203, %p204
      %p206 = scmp.ne.s32.totalorder %s195, %s198
      %p207 = scmp.eq.s32.totalorder %s24, 3
      %p208 = por %p206, %p207
      %p209 = scmp.ne.s32.totalorder %s198, %s199
      %p210 = scmp.eq.s32.totalorder %s24, 0
      %p211 = por %p209, %p210
      %p212 = scmp.ne.s32.totalorder %s198, %s199
      %p213 = scmp.eq.s32.totalorder %s25, 3
      %p214 = por %p212, %p213
      %p216 = scmp.ne.s32.totalorder %s199, %s215
      %p217 = scmp.eq.s32.totalorder %s25, 0
      %p218 = por %p216, %p217
      %s219 = ssub.s32 %s26, %s38
      %p220 = scmp.eq.s32.totalorder %s219, 0
      %s222 = sadd.s32 %s221, 1
      %s223 = scalar_select %p220, %s221, %s222
      %p226 = pneg %p220
      %p227 = scmp.eq.s32.totalorder %s19, 3
      %p228 = por %p226, %p227
      %p229 = scmp.ne.s32.totalorder %s221, %s224
      %p230 = scmp.eq.s32.totalorder %s19, 0
      %p231 = por %p229, %p230
      %p232 = scmp.ne.s32.totalorder %s221, %s224
      %p233 = scmp.eq.s32.totalorder %s24, 3
      %p234 = por %p232, %p233
      %p235 = scmp.ne.s32.totalorder %s224, %s225
      %p236 = scmp.eq.s32.totalorder %s24, 0
      %p237 = por %p235, %p236
      %p238 = scmp.ne.s32.totalorder %s224, %s225
      %p239 = scmp.eq.s32.totalorder %s25, 3
      %p240 = por %p238, %p239
      %p242 = scmp.ne.s32.totalorder %s225, %s241
      %p243 = scmp.eq.s32.totalorder %s25, 0
      %p244 = por %p242, %p243
      %p245 = scmp.le.s32.totalorder 1, %s19
      %p246 = scmp.lt.s32.totalorder %s19, 5
      %p247 = pnand %p245, %p246
      %p248 = pneg %p247
      // Predicated region
      $region9: #{a_call__.1} parent=5 // pred_check
        _
      $region10: #{a_call__.1} parent=5 // pred_check_branch
        %250 = sbr.rel (%p247) target = $region12
      $region11: #{a_call__.1} parent=5 // pred_region
        %s251 = ssub.s32 %s19, 1
        // Predicated region
        $region13: #{a_call__.1} parent=11 // pred_check
          %p252 = pneg %p80
        $region14: #{a_call__.1} parent=11 // pred_check_branch
          %254 = sbr.rel (%p252) target = $region16
        $region15: #{a_call__.1} parent=11 // pred_region
          _
        $region16: #{a_call__.1} parent=11 // pred_fallthru
          _
        // Predicated region
        $region17: #{a_call__.1} parent=11 // pred_check
          %p255 = pneg %p101
        $region18: #{a_call__.1} parent=11 // pred_check_branch
          %257 = sbr.rel (%p255) target = $region20
        $region19: #{a_call__.1} parent=11 // pred_region
          _
        $region20: #{a_call__.1} parent=11 // pred_fallthru
          _
        // Predicated region
        $region21: #{a_call__.1} parent=11 // pred_check
          %p258 = pneg %p122
        $region22: #{a_call__.1} parent=11 // pred_check_branch
          %260 = sbr.rel (%p258) target = $region24
        $region23: #{a_call__.1} parent=11 // pred_region
          _
        $region24: #{a_call__.1} parent=11 // pred_fallthru
          _
        // Predicated region
        $region25: #{a_call__.1} parent=11 // pred_check
          %p261 = pneg %p143
        $region26: #{a_call__.1} parent=11 // pred_check_branch
          %263 = sbr.rel (%p261) target = $region28
        $region27: #{a_call__.1} parent=11 // pred_region
          _
        $region28: #{a_call__.1} parent=11 // pred_fallthru
          _
        // Predicated region
        $region29: #{a_call__.1} parent=11 // pred_check
          %p264 = pneg %p164
        $region30: #{a_call__.1} parent=11 // pred_check_branch
          %266 = sbr.rel (%p264) target = $region32
        $region31: #{a_call__.1} parent=11 // pred_region
          _
        $region32: #{a_call__.1} parent=11 // pred_fallthru
          _
        // Predicated region
        $region33: #{a_call__.1} parent=11 // pred_check
          %p267 = pneg %p185
        $region34: #{a_call__.1} parent=11 // pred_check_branch
          %269 = sbr.rel (%p267) target = $region36
        $region35: #{a_call__.1} parent=11 // pred_region
          _
        $region36: #{a_call__.1} parent=11 // pred_fallthru
          _
      $region12: #{a_call__.1} parent=5 // pred_fallthru
        _
      %p270 = scmp.lt.s32.totalorder %s19, 4
      // Predicated region
      $region37: #{a_call__.1} parent=5 // pred_check
        %p271 = pneg %p270
      $region38: #{a_call__.1} parent=5 // pred_check_branch
        %273 = sbr.rel (%p271) target = $region40
      $region39: #{a_call__.1} parent=5 // pred_region
        // Predicated region
        $region41: #{a_call__.1} parent=39 // pred_check
          %p274 = pneg %p53
        $region42: #{a_call__.1} parent=39 // pred_check_branch
          %276 = sbr.rel (%p274) target = $region44
        $region43: #{a_call__.1} parent=39 // pred_region
          %p277 = scmp.lt.s32.totalorder %s26, 1
          %s278 = scalar_select %p277, %s26, 1
          %p279 = scmp.lt.s32.totalorder %s27, 1
          %s280 = scalar_select %p279, %s27, 1
          %s281 = smul.addr %s280, 30
          %s282 = smul.addr %s278, 60
          %s283 = sadd.s32 %s281, %s282
          %s284 = smul.addr %s283, 8
          %s285 = scalar_lea.vmem %s0, %s284
        $region44: #{a_call__.1} parent=39 // pred_fallthru
          _
      $region40: #{a_call__.1} parent=5 // pred_fallthru
        _
      %p286 = scmp.le.s32.totalorder 1, %s19
      %p287 = scmp.lt.s32.totalorder %s19, 5
      %p288 = pnand %p286, %p287
      %p289 = pneg %p288
      // Predicated region
      $region45: #{a_call__.1} parent=5 // pred_check
        _
      $region46: #{a_call__.1} parent=5 // pred_check_branch
        %291 = sbr.rel (%p288) target = $region48
      $region47: #{a_call__.1} parent=5 // pred_region
        %s292 = ssub.s32 %s19, 1
        %p293 = scmp.lt.s32.totalorder %s28, 1
        %s294 = scalar_select %p293, %s28, 1
        %p295 = scmp.lt.s32.totalorder %s29, 1
        %s296 = scalar_select %p295, %s29, 1
        %s297 = smul.addr %s296, 30
        %s298 = smul.addr %s294, 60
        %s299 = sadd.s32 %s297, %s298
        %s300 = smul.addr %s299, 8
        %s301 = scalar_lea.vmem %s0, %s300
        %p302 = pneg %p59
        %p303 = pneg %p56
        %p304 = pneg %p80
        %p305 = pneg %p77
        %p306 = pneg %p101
        %p307 = pneg %p98
        %p308 = pneg %p122
        %p309 = pneg %p119
        %p310 = pneg %p143
        %p311 = pneg %p140
        %p312 = pneg %p164
        %p313 = pneg %p161
        %p314 = pneg %p185
        %p315 = pneg %p182
        %p316 = pneg %p211
        %p317 = pneg %p208
        %s318 = sand.u32 %s198, 1
        %s319 = scalar_lea.sflag [#allocation4], %s318
        %s320 = sand.u32 %s198, 1
        %s321 = scalar_lea.vmem [#allocation3], %s320
        %p322 = pneg %p237
        %p323 = pneg %p234
        %p324 = scmp.lt.s32.totalorder %s28, 1
        %s325 = scalar_select %p324, %s28, 1
        %s326 = scalar_lea.vmem %s8, %s325
        %p327 = scmp.lt.s32.totalorder %s28, 1
        %s328 = scalar_select %p327, %s28, 1
        %p329 = scmp.lt.s32.totalorder %s29, 1
        %s330 = scalar_select %p329, %s29, 1
        %s331 = smul.addr %s330, 30
        %s332 = smul.addr %s328, 60
        %s333 = sadd.s32 %s331, %s332
        %s334 = smul.addr %s333, 8
        %s335 = scalar_lea.vmem %s0, %s334
        %p336 = scmp.lt.s32.totalorder %s28, 1
        %s337 = scalar_select %p336, %s28, 1
        %s338 = scalar_lea.vmem %s8, %s337
        %p340 = scmp.eq.s32.totalorder %s29, 0
        // Predicated region
        $region49: #{a_call__.1} parent=47 // pred_check
          %p341 = pneg %p340
        $region50: #{a_call__.1} parent=47 // pred_check_branch
          %343 = sbr.rel (%p341) target = $region52
        $region51: #{a_call__.1} parent=47 // pred_region
          %344 = vst [vmem:[%s321] sm:$0x1] 0.0
        $region52: #{a_call__.1} parent=47 // pred_fallthru
          _
        %v345 = vld [vmem:[%s335] sm:$0xff]
        %v346 = vld [vmem:[%s335 + $0x8] sm:$0xff]
        %v347 = vld [vmem:[%s335 + $0x10] sm:$0x3]
        %v348 = vld [vmem:[%s335 + $0x18] sm:$0xff]
        %v349 = vld [vmem:[%s335 + $0x20] sm:$0xff]
        %v350 = vld [vmem:[%s335 + $0x28] sm:$0x3]
        %v351 = vld [vmem:[%s335 + $0x30] sm:$0xff]
        %v352 = vld [vmem:[%s335 + $0x38] sm:$0xff]
        %v353 = vld [vmem:[%s335 + $0x40] sm:$0x3]
        %v354 = vld [vmem:[%s335 + $0x48] sm:$0xff]
        %v355 = vld [vmem:[%s335 + $0x50] sm:$0xff]
        %v356 = vld [vmem:[%s335 + $0x58] sm:$0x3]
        %v357 = vld [vmem:[%s335 + $0x60] sm:$0xff]
        %v358 = vld [vmem:[%s335 + $0x68] sm:$0xff]
        %v359 = vld [vmem:[%s335 + $0x70] sm:$0x3]
        %v360 = vld [vmem:[%s335 + $0x78] sm:$0xff]
        %v361 = vld [vmem:[%s335 + $0x80] sm:$0xff]
        %v362 = vld [vmem:[%s335 + $0x88] sm:$0x3]
        %v363 = vld [vmem:[%s335 + $0x90] sm:$0xff]
        %v364 = vld [vmem:[%s335 + $0x98] sm:$0xff]
        %v365 = vld [vmem:[%s335 + $0xa0] sm:$0x3]
        %v366 = vld [vmem:[%s335 + $0xa8] sm:$0xff]
        %v367 = vld [vmem:[%s335 + $0xb0] sm:$0xff]
        %v368 = vld [vmem:[%s335 + $0xb8] sm:$0x3]
        %v369 = vld [vmem:[%s335 + $0xc0] sm:$0xff]
        %v370 = vld [vmem:[%s335 + $0xc8] sm:$0xff]
        %v371 = vld [vmem:[%s335 + $0xd0] sm:$0x3]
        %v372 = vld [vmem:[%s335 + $0xd8] sm:$0xff]
        %v373 = vld [vmem:[%s335 + $0xe0] sm:$0xff]
        %v374 = vld [vmem:[%s335 + $0xe8] sm:$0x3]
        %v375 = vld [vmem:[%s1] sm:$0xff]
        %v376 = vld [vmem:[%s1 + $0x8] sm:$0x1]
        %378 = vset.pattern.permute.xlu0 0
        %379 = vperm.xlu0 %378, %v345
        %v380 = vpop.permute.xlu0 %379
        %383 = vset.pattern.permute.xlu0 0
        %384 = vperm.xlu0 %383, %v346
        %v385 = vpop.permute.xlu0 %384
        %388 = vset.pattern.permute.xlu0 0
        %389 = vperm.xlu0 %388, %v348
        %v390 = vpop.permute.xlu0 %389
        %393 = vset.pattern.permute.xlu0 0
        %394 = vperm.xlu0 %393, %v349
        %v395 = vpop.permute.xlu0 %394
        %398 = vset.pattern.permute.xlu0 0
        %399 = vperm.xlu0 %398, %v351
        %v400 = vpop.permute.xlu0 %399
        %403 = vset.pattern.permute.xlu0 0
        %404 = vperm.xlu0 %403, %v352
        %v405 = vpop.permute.xlu0 %404
        %408 = vset.pattern.permute.xlu0 0
        %409 = vperm.xlu0 %408, %v354
        %v410 = vpop.permute.xlu0 %409
        %413 = vset.pattern.permute.xlu0 0
        %414 = vperm.xlu0 %413, %v355
        %v415 = vpop.permute.xlu0 %414
        %418 = vset.pattern.permute.xlu0 0
        %419 = vperm.xlu0 %418, %v357
        %v420 = vpop.permute.xlu0 %419
        %423 = vset.pattern.permute.xlu0 0
        %424 = vperm.xlu0 %423, %v358
        %v425 = vpop.permute.xlu0 %424
        %428 = vset.pattern.permute.xlu0 0
        %429 = vperm.xlu0 %428, %v360
        %v430 = vpop.permute.xlu0 %429
        %433 = vset.pattern.permute.xlu0 0
        %434 = vperm.xlu0 %433, %v361
        %v435 = vpop.permute.xlu0 %434
        %438 = vset.pattern.permute.xlu0 0
        %439 = vperm.xlu0 %438, %v363
        %v440 = vpop.permute.xlu0 %439
        %443 = vset.pattern.permute.xlu0 0
        %444 = vperm.xlu0 %443, %v364
        %v445 = vpop.permute.xlu0 %444
        %448 = vset.pattern.permute.xlu0 0
        %449 = vperm.xlu0 %448, %v366
        %v450 = vpop.permute.xlu0 %449
        %453 = vset.pattern.permute.xlu0 0
        %454 = vperm.xlu0 %453, %v367
        %v455 = vpop.permute.xlu0 %454
        %v457 = vlaneseq
        %v458 = vshrl.u32 %v457, 7
        %v459 = vsub.s32 0, %v458
        %v460 = vrot.slane %v375, %v459
        %v461 = vmul.f32 %v380, %v460
        %v462 = vmul.f32 %v385, %v460
        %v463 = vmul.f32 %v390, %v460
        %v464 = vmul.f32 %v395, %v460
        %v465 = vmul.f32 %v400, %v460
        %v466 = vmul.f32 %v405, %v460
        %v467 = vmul.f32 %v410, %v460
        %v468 = vmul.f32 %v415, %v460
        %v469 = vmul.f32 %v420, %v460
        %v470 = vmul.f32 %v425, %v460
        %v471 = vmul.f32 %v430, %v460
        %v472 = vmul.f32 %v435, %v460
        %v473 = vmul.f32 %v440, %v460
        %v474 = vmul.f32 %v445, %v460
        %v475 = vmul.f32 %v450, %v460
        %v476 = vmul.f32 %v455, %v460
        %v477 = vadd.f32 %v461, 0.0
        %v478 = vadd.f32 %v462, 0.0
        %v479 = vadd.f32 %v463, 0.0
        %v480 = vadd.f32 %v464, 0.0
        %v481 = vadd.f32 %v465, 0.0
        %v482 = vadd.f32 %v466, 0.0
        %v483 = vadd.f32 %v467, 0.0
        %v484 = vadd.f32 %v468, 0.0
        %v485 = vadd.f32 %v469, 0.0
        %v486 = vadd.f32 %v470, 0.0
        %v487 = vadd.f32 %v471, 0.0
        %v488 = vadd.f32 %v472, 0.0
        %v489 = vadd.f32 %v473, 0.0
        %v490 = vadd.f32 %v474, 0.0
        %v491 = vadd.f32 %v475, 0.0
        %v492 = vadd.f32 %v476, 0.0
        %494 = vset.pattern.permute.xlu0 0
        %495 = vperm.xlu0 %494, %v347
        %v496 = vpop.permute.xlu0 %495
        %499 = vset.pattern.permute.xlu0 0
        %500 = vperm.xlu0 %499, %v350
        %v501 = vpop.permute.xlu0 %500
        %504 = vset.pattern.permute.xlu0 0
        %505 = vperm.xlu0 %504, %v353
        %v506 = vpop.permute.xlu0 %505
        %509 = vset.pattern.permute.xlu0 0
        %510 = vperm.xlu0 %509, %v356
        %v511 = vpop.permute.xlu0 %510
        %514 = vset.pattern.permute.xlu0 0
        %515 = vperm.xlu0 %514, %v359
        %v516 = vpop.permute.xlu0 %515
        %519 = vset.pattern.permute.xlu0 0
        %520 = vperm.xlu0 %519, %v362
        %v521 = vpop.permute.xlu0 %520
        %524 = vset.pattern.permute.xlu0 0
        %525 = vperm.xlu0 %524, %v365
        %v526 = vpop.permute.xlu0 %525
        %529 = vset.pattern.permute.xlu0 0
        %530 = vperm.xlu0 %529, %v368
        %v531 = vpop.permute.xlu0 %530
        %v533 = vlaneseq
        %v534 = vshrl.u32 %v533, 7
        %v535 = vsub.s32 1, %v534
        %v536 = vrot.slane %v375, %v535
        %v537 = vmul.f32 %v380, %v536
        %v538 = vmul.f32 %v385, %v536
        %v539 = vmul.f32 %v496, %v536
        %v540 = vmul.f32 %v390, %v536
        %v541 = vmul.f32 %v395, %v536
        %v542 = vmul.f32 %v501, %v536
        %v543 = vmul.f32 %v400, %v536
        %v544 = vmul.f32 %v405, %v536
        %v545 = vmul.f32 %v506, %v536
        %v546 = vmul.f32 %v410, %v536
        %v547 = vmul.f32 %v415, %v536
        %v548 = vmul.f32 %v511, %v536
        %v549 = vmul.f32 %v420, %v536
        %v550 = vmul.f32 %v425, %v536
        %v551 = vmul.f32 %v516, %v536
        %v552 = vmul.f32 %v430, %v536
        %v553 = vmul.f32 %v435, %v536
        %v554 = vmul.f32 %v521, %v536
        %v555 = vmul.f32 %v440, %v536
        %v556 = vmul.f32 %v445, %v536
        %v557 = vmul.f32 %v526, %v536
        %v558 = vmul.f32 %v450, %v536
        %v559 = vmul.f32 %v455, %v536
        %v560 = vmul.f32 %v531, %v536
        %vm585 = vcmask 1046528
        %v586 = vrot.slane %v537, 1
        %v587 = vrot.slane %v538, 1
        %v588 = vsel %vm585, %v586, %v587
        %v589 = vrot.slane %v539, 1
        %v590 = vsel %vm585, %v587, %v589
        %v591 = vrot.slane %v540, 1
        %v592 = vrot.slane %v541, 1
        %v593 = vsel %vm585, %v591, %v592
        %v594 = vrot.slane %v542, 1
        %v595 = vsel %vm585, %v592, %v594
        %v596 = vrot.slane %v543, 1
        %v597 = vrot.slane %v544, 1
        %v598 = vsel %vm585, %v596, %v597
        %v599 = vrot.slane %v545, 1
        %v600 = vsel %vm585, %v597, %v599
        %v601 = vrot.slane %v546, 1
        %v602 = vrot.slane %v547, 1
        %v603 = vsel %vm585, %v601, %v602
        %v604 = vrot.slane %v548, 1
        %v605 = vsel %vm585, %v602, %v604
        %v606 = vrot.slane %v549, 1
        %v607 = vrot.slane %v550, 1
        %v608 = vsel %vm585, %v606, %v607
        %v609 = vrot.slane %v551, 1
        %v610 = vsel %vm585, %v607, %v609
        %v611 = vrot.slane %v552, 1
        %v612 = vrot.slane %v553, 1
        %v613 = vsel %vm585, %v611, %v612
        %v614 = vrot.slane %v554, 1
        %v615 = vsel %vm585, %v612, %v614
        %v616 = vrot.slane %v555, 1
        %v617 = vrot.slane %v556, 1
        %v618 = vsel %vm585, %v616, %v617
        %v619 = vrot.slane %v557, 1
        %v620 = vsel %vm585, %v617, %v619
        %v621 = vrot.slane %v558, 1
        %v622 = vrot.slane %v559, 1
        %v623 = vsel %vm585, %v621, %v622
        %v624 = vrot.slane %v560, 1
        %v625 = vsel %vm585, %v622, %v624
        %v642 = vadd.f32 %v477, %v588
        %v643 = vadd.f32 %v478, %v590
        %v644 = vadd.f32 %v479, %v593
        %v645 = vadd.f32 %v480, %v595
        %v646 = vadd.f32 %v481, %v598
        %v647 = vadd.f32 %v482, %v600
        %v648 = vadd.f32 %v483, %v603
        %v649 = vadd.f32 %v484, %v605
        %v650 = vadd.f32 %v485, %v608
        %v651 = vadd.f32 %v486, %v610
        %v652 = vadd.f32 %v487, %v613
        %v653 = vadd.f32 %v488, %v615
        %v654 = vadd.f32 %v489, %v618
        %v655 = vadd.f32 %v490, %v620
        %v656 = vadd.f32 %v491, %v623
        %v657 = vadd.f32 %v492, %v625
        %v658 = vlaneseq
        %v659 = vshrl.u32 %v658, 7
        %v660 = vsub.s32 2, %v659
        %v661 = vrot.slane %v375, %v660
        %v662 = vmul.f32 %v380, %v661
        %v663 = vmul.f32 %v385, %v661
        %v664 = vmul.f32 %v496, %v661
        %v665 = vmul.f32 %v390, %v661
        %v666 = vmul.f32 %v395, %v661
        %v667 = vmul.f32 %v501, %v661
        %v668 = vmul.f32 %v400, %v661
        %v669 = vmul.f32 %v405, %v661
        %v670 = vmul.f32 %v506, %v661
        %v671 = vmul.f32 %v410, %v661
        %v672 = vmul.f32 %v415, %v661
        %v673 = vmul.f32 %v511, %v661
        %v674 = vmul.f32 %v420, %v661
        %v675 = vmul.f32 %v425, %v661
        %v676 = vmul.f32 %v516, %v661
        %v677 = vmul.f32 %v430, %v661
        %v678 = vmul.f32 %v435, %v661
        %v679 = vmul.f32 %v521, %v661
        %v680 = vmul.f32 %v440, %v661
        %v681 = vmul.f32 %v445, %v661
        %v682 = vmul.f32 %v526, %v661
        %v683 = vmul.f32 %v450, %v661
        %v684 = vmul.f32 %v455, %v661
        %v685 = vmul.f32 %v531, %v661
        %vm710 = vcmask 1045504
        %v711 = vrot.slane %v662, 2
        %v712 = vrot.slane %v663, 2
        %v713 = vsel %vm710, %v711, %v712
        %v714 = vrot.slane %v664, 2
        %v715 = vsel %vm710, %v712, %v714
        %v716 = vrot.slane %v665, 2
        %v717 = vrot.slane %v666, 2
        %v718 = vsel %vm710, %v716, %v717
        %v719 = vrot.slane %v667, 2
        %v720 = vsel %vm710, %v717, %v719
        %v721 = vrot.slane %v668, 2
        %v722 = vrot.slane %v669, 2
        %v723 = vsel %vm710, %v721, %v722
        %v724 = vrot.slane %v670, 2
        %v725 = vsel %vm710, %v722, %v724
        %v726 = vrot.slane %v671, 2
        %v727 = vrot.slane %v672, 2
        %v728 = vsel %vm710, %v726, %v727
        %v729 = vrot.slane %v673, 2
        %v730 = vsel %vm710, %v727, %v729
        %v731 = vrot.slane %v674, 2
        %v732 = vrot.slane %v675, 2
        %v733 = vsel %vm710, %v731, %v732
        %v734 = vrot.slane %v676, 2
        %v735 = vsel %vm710, %v732, %v734
        %v736 = vrot.slane %v677, 2
        %v737 = vrot.slane %v678, 2
        %v738 = vsel %vm710, %v736, %v737
        %v739 = vrot.slane %v679, 2
        %v740 = vsel %vm710, %v737, %v739
        %v741 = vrot.slane %v680, 2
        %v742 = vrot.slane %v681, 2
        %v743 = vsel %vm710, %v741, %v742
        %v744 = vrot.slane %v682, 2
        %v745 = vsel %vm710, %v742, %v744
        %v746 = vrot.slane %v683, 2
        %v747 = vrot.slane %v684, 2
        %v748 = vsel %vm710, %v746, %v747
        %v749 = vrot.slane %v685, 2
        %v750 = vsel %vm710, %v747, %v749
        %v767 = vadd.f32 %v642, %v713
        %v768 = vadd.f32 %v643, %v715
        %v769 = vadd.f32 %v644, %v718
        %v770 = vadd.f32 %v645, %v720
        %v771 = vadd.f32 %v646, %v723
        %v772 = vadd.f32 %v647, %v725
        %v773 = vadd.f32 %v648, %v728
        %v774 = vadd.f32 %v649, %v730
        %v775 = vadd.f32 %v650, %v733
        %v776 = vadd.f32 %v651, %v735
        %v777 = vadd.f32 %v652, %v738
        %v778 = vadd.f32 %v653, %v740
        %v779 = vadd.f32 %v654, %v743
        %v780 = vadd.f32 %v655, %v745
        %v781 = vadd.f32 %v656, %v748
        %v782 = vadd.f32 %v657, %v750
        %784 = vset.pattern.permute.xlu0 0
        %785 = vperm.xlu0 %784, %v369
        %v786 = vpop.permute.xlu0 %785
        %789 = vset.pattern.permute.xlu0 0
        %790 = vperm.xlu0 %789, %v370
        %v791 = vpop.permute.xlu0 %790
        %v793 = vlaneseq
        %v794 = vshrl.u32 %v793, 7
        %v795 = vsub.s32 3, %v794
        %v796 = vrot.slane %v375, %v795
        %v797 = vmul.f32 %v390, %v796
        %v798 = vmul.f32 %v395, %v796
        %v799 = vmul.f32 %v400, %v796
        %v800 = vmul.f32 %v405, %v796
        %v801 = vmul.f32 %v410, %v796
        %v802 = vmul.f32 %v415, %v796
        %v803 = vmul.f32 %v420, %v796
        %v804 = vmul.f32 %v425, %v796
        %v805 = vmul.f32 %v430, %v796
        %v806 = vmul.f32 %v435, %v796
        %v807 = vmul.f32 %v440, %v796
        %v808 = vmul.f32 %v445, %v796
        %v809 = vmul.f32 %v450, %v796
        %v810 = vmul.f32 %v455, %v796
        %v811 = vmul.f32 %v786, %v796
        %v812 = vmul.f32 %v791, %v796
        %v813 = vadd.f32 %v767, %v797
        %v814 = vadd.f32 %v768, %v798
        %v815 = vadd.f32 %v769, %v799
        %v816 = vadd.f32 %v770, %v800
        %v817 = vadd.f32 %v771, %v801
        %v818 = vadd.f32 %v772, %v802
        %v819 = vadd.f32 %v773, %v803
        %v820 = vadd.f32 %v774, %v804
        %v821 = vadd.f32 %v775, %v805
        %v822 = vadd.f32 %v776, %v806
        %v823 = vadd.f32 %v777, %v807
        %v824 = vadd.f32 %v778, %v808
        %v825 = vadd.f32 %v779, %v809
        %v826 = vadd.f32 %v780, %v810
        %v827 = vadd.f32 %v781, %v811
        %v828 = vadd.f32 %v782, %v812
        %830 = vset.pattern.permute.xlu0 0
        %831 = vperm.xlu0 %830, %v371
        %v832 = vpop.permute.xlu0 %831
        %v834 = vlaneseq
        %v835 = vshrl.u32 %v834, 7
        %v836 = vsub.s32 4, %v835
        %v837 = vrot.slane %v375, %v836
        %v838 = vmul.f32 %v390, %v837
        %v839 = vmul.f32 %v395, %v837
        %v840 = vmul.f32 %v501, %v837
        %v841 = vmul.f32 %v400, %v837
        %v842 = vmul.f32 %v405, %v837
        %v843 = vmul.f32 %v506, %v837
        %v844 = vmul.f32 %v410, %v837
        %v845 = vmul.f32 %v415, %v837
        %v846 = vmul.f32 %v511, %v837
        %v847 = vmul.f32 %v420, %v837
        %v848 = vmul.f32 %v425, %v837
        %v849 = vmul.f32 %v516, %v837
        %v850 = vmul.f32 %v430, %v837
        %v851 = vmul.f32 %v435, %v837
        %v852 = vmul.f32 %v521, %v837
        %v853 = vmul.f32 %v440, %v837
        %v854 = vmul.f32 %v445, %v837
        %v855 = vmul.f32 %v526, %v837
        %v856 = vmul.f32 %v450, %v837
        %v857 = vmul.f32 %v455, %v837
        %v858 = vmul.f32 %v531, %v837
        %v859 = vmul.f32 %v786, %v837
        %v860 = vmul.f32 %v791, %v837
        %v861 = vmul.f32 %v832, %v837
        %v886 = vrot.slane %v838, 1
        %v887 = vrot.slane %v839, 1
        %v888 = vsel %vm585, %v886, %v887
        %v889 = vrot.slane %v840, 1
        %v890 = vsel %vm585, %v887, %v889
        %v891 = vrot.slane %v841, 1
        %v892 = vrot.slane %v842, 1
        %v893 = vsel %vm585, %v891, %v892
        %v894 = vrot.slane %v843, 1
        %v895 = vsel %vm585, %v892, %v894
        %v896 = vrot.slane %v844, 1
        %v897 = vrot.slane %v845, 1
        %v898 = vsel %vm585, %v896, %v897
        %v899 = vrot.slane %v846, 1
        %v900 = vsel %vm585, %v897, %v899
        %v901 = vrot.slane %v847, 1
        %v902 = vrot.slane %v848, 1
        %v903 = vsel %vm585, %v901, %v902
        %v904 = vrot.slane %v849, 1
        %v905 = vsel %vm585, %v902, %v904
        %v906 = vrot.slane %v850, 1
        %v907 = vrot.slane %v851, 1
        %v908 = vsel %vm585, %v906, %v907
        %v909 = vrot.slane %v852, 1
        %v910 = vsel %vm585, %v907, %v909
        %v911 = vrot.slane %v853, 1
        %v912 = vrot.slane %v854, 1
        %v913 = vsel %vm585, %v911, %v912
        %v914 = vrot.slane %v855, 1
        %v915 = vsel %vm585, %v912, %v914
        %v916 = vrot.slane %v856, 1
        %v917 = vrot.slane %v857, 1
        %v918 = vsel %vm585, %v916, %v917
        %v919 = vrot.slane %v858, 1
        %v920 = vsel %vm585, %v917, %v919
        %v921 = vrot.slane %v859, 1
        %v922 = vrot.slane %v860, 1
        %v923 = vsel %vm585, %v921, %v922
        %v924 = vrot.slane %v861, 1
        %v925 = vsel %vm585, %v922, %v924
        %v942 = vadd.f32 %v813, %v888
        %v943 = vadd.f32 %v814, %v890
        %v944 = vadd.f32 %v815, %v893
        %v945 = vadd.f32 %v816, %v895
        %v946 = vadd.f32 %v817, %v898
        %v947 = vadd.f32 %v818, %v900
        %v948 = vadd.f32 %v819, %v903
        %v949 = vadd.f32 %v820, %v905
        %v950 = vadd.f32 %v821, %v908
        %v951 = vadd.f32 %v822, %v910
        %v952 = vadd.f32 %v823, %v913
        %v953 = vadd.f32 %v824, %v915
        %v954 = vadd.f32 %v825, %v918
        %v955 = vadd.f32 %v826, %v920
        %v956 = vadd.f32 %v827, %v923
        %v957 = vadd.f32 %v828, %v925
        %v958 = vlaneseq
        %v959 = vshrl.u32 %v958, 7
        %v960 = vsub.s32 5, %v959
        %v961 = vrot.slane %v375, %v960
        %v962 = vmul.f32 %v390, %v961
        %v963 = vmul.f32 %v395, %v961
        %v964 = vmul.f32 %v501, %v961
        %v965 = vmul.f32 %v400, %v961
        %v966 = vmul.f32 %v405, %v961
        %v967 = vmul.f32 %v506, %v961
        %v968 = vmul.f32 %v410, %v961
        %v969 = vmul.f32 %v415, %v961
        %v970 = vmul.f32 %v511, %v961
        %v971 = vmul.f32 %v420, %v961
        %v972 = vmul.f32 %v425, %v961
        %v973 = vmul.f32 %v516, %v961
        %v974 = vmul.f32 %v430, %v961
        %v975 = vmul.f32 %v435, %v961
        %v976 = vmul.f32 %v521, %v961
        %v977 = vmul.f32 %v440, %v961
        %v978 = vmul.f32 %v445, %v961
        %v979 = vmul.f32 %v526, %v961
        %v980 = vmul.f32 %v450, %v961
        %v981 = vmul.f32 %v455, %v961
        %v982 = vmul.f32 %v531, %v961
        %v983 = vmul.f32 %v786, %v961
        %v984 = vmul.f32 %v791, %v961
        %v985 = vmul.f32 %v832, %v961
        %v1010 = vrot.slane %v962, 2
        %v1011 = vrot.slane %v963, 2
        %v1012 = vsel %vm710, %v1010, %v1011
        %v1013 = vrot.slane %v964, 2
        %v1014 = vsel %vm710, %v1011, %v1013
        %v1015 = vrot.slane %v965, 2
        %v1016 = vrot.slane %v966, 2
        %v1017 = vsel %vm710, %v1015, %v1016
        %v1018 = vrot.slane %v967, 2
        %v1019 = vsel %vm710, %v1016, %v1018
        %v1020 = vrot.slane %v968, 2
        %v1021 = vrot.slane %v969, 2
        %v1022 = vsel %vm710, %v1020, %v1021
        %v1023 = vrot.slane %v970, 2
        %v1024 = vsel %vm710, %v1021, %v1023
        %v1025 = vrot.slane %v971, 2
        %v1026 = vrot.slane %v972, 2
        %v1027 = vsel %vm710, %v1025, %v1026
        %v1028 = vrot.slane %v973, 2
        %v1029 = vsel %vm710, %v1026, %v1028
        %v1030 = vrot.slane %v974, 2
        %v1031 = vrot.slane %v975, 2
        %v1032 = vsel %vm710, %v1030, %v1031
        %v1033 = vrot.slane %v976, 2
        %v1034 = vsel %vm710, %v1031, %v1033
        %v1035 = vrot.slane %v977, 2
        %v1036 = vrot.slane %v978, 2
        %v1037 = vsel %vm710, %v1035, %v1036
        %v1038 = vrot.slane %v979, 2
        %v1039 = vsel %vm710, %v1036, %v1038
        %v1040 = vrot.slane %v980, 2
        %v1041 = vrot.slane %v981, 2
        %v1042 = vsel %vm710, %v1040, %v1041
        %v1043 = vrot.slane %v982, 2
        %v1044 = vsel %vm710, %v1041, %v1043
        %v1045 = vrot.slane %v983, 2
        %v1046 = vrot.slane %v984, 2
        %v1047 = vsel %vm710, %v1045, %v1046
        %v1048 = vrot.slane %v985, 2
        %v1049 = vsel %vm710, %v1046, %v1048
        %v1066 = vadd.f32 %v942, %v1012
        %v1067 = vadd.f32 %v943, %v1014
        %v1068 = vadd.f32 %v944, %v1017
        %v1069 = vadd.f32 %v945, %v1019
        %v1070 = vadd.f32 %v946, %v1022
        %v1071 = vadd.f32 %v947, %v1024
        %v1072 = vadd.f32 %v948, %v1027
        %v1073 = vadd.f32 %v949, %v1029
        %v1074 = vadd.f32 %v950, %v1032
        %v1075 = vadd.f32 %v951, %v1034
        %v1076 = vadd.f32 %v952, %v1037
        %v1077 = vadd.f32 %v953, %v1039
        %v1078 = vadd.f32 %v954, %v1042
        %v1079 = vadd.f32 %v955, %v1044
        %v1080 = vadd.f32 %v956, %v1047
        %v1081 = vadd.f32 %v957, %v1049
        %1083 = vset.pattern.permute.xlu0 0
        %1084 = vperm.xlu0 %1083, %v372
        %v1085 = vpop.permute.xlu0 %1084
        %1088 = vset.pattern.permute.xlu0 0
        %1089 = vperm.xlu0 %1088, %v373
        %v1090 = vpop.permute.xlu0 %1089
        %v1092 = vlaneseq
        %v1093 = vshrl.u32 %v1092, 7
        %v1094 = vsub.s32 6, %v1093
        %v1095 = vrot.slane %v375, %v1094
        %v1096 = vmul.f32 %v400, %v1095
        %v1097 = vmul.f32 %v405, %v1095
        %v1098 = vmul.f32 %v410, %v1095
        %v1099 = vmul.f32 %v415, %v1095
        %v1100 = vmul.f32 %v420, %v1095
        %v1101 = vmul.f32 %v425, %v1095
        %v1102 = vmul.f32 %v430, %v1095
        %v1103 = vmul.f32 %v435, %v1095
        %v1104 = vmul.f32 %v440, %v1095
        %v1105 = vmul.f32 %v445, %v1095
        %v1106 = vmul.f32 %v450, %v1095
        %v1107 = vmul.f32 %v455, %v1095
        %v1108 = vmul.f32 %v786, %v1095
        %v1109 = vmul.f32 %v791, %v1095
        %v1110 = vmul.f32 %v1085, %v1095
        %v1111 = vmul.f32 %v1090, %v1095
        %v1112 = vadd.f32 %v1066, %v1096
        %v1113 = vadd.f32 %v1067, %v1097
        %v1114 = vadd.f32 %v1068, %v1098
        %v1115 = vadd.f32 %v1069, %v1099
        %v1116 = vadd.f32 %v1070, %v1100
        %v1117 = vadd.f32 %v1071, %v1101
        %v1118 = vadd.f32 %v1072, %v1102
        %v1119 = vadd.f32 %v1073, %v1103
        %v1120 = vadd.f32 %v1074, %v1104
        %v1121 = vadd.f32 %v1075, %v1105
        %v1122 = vadd.f32 %v1076, %v1106
        %v1123 = vadd.f32 %v1077, %v1107
        %v1124 = vadd.f32 %v1078, %v1108
        %v1125 = vadd.f32 %v1079, %v1109
        %v1126 = vadd.f32 %v1080, %v1110
        %v1127 = vadd.f32 %v1081, %v1111
        %1129 = vset.pattern.permute.xlu0 0
        %1130 = vperm.xlu0 %1129, %v374
        %v1131 = vpop.permute.xlu0 %1130
        %v1133 = vlaneseq
        %v1134 = vshrl.u32 %v1133, 7
        %v1135 = vsub.s32 7, %v1134
        %v1136 = vrot.slane %v375, %v1135
        %v1137 = vmul.f32 %v400, %v1136
        %v1138 = vmul.f32 %v405, %v1136
        %v1139 = vmul.f32 %v506, %v1136
        %v1140 = vmul.f32 %v410, %v1136
        %v1141 = vmul.f32 %v415, %v1136
        %v1142 = vmul.f32 %v511, %v1136
        %v1143 = vmul.f32 %v420, %v1136
        %v1144 = vmul.f32 %v425, %v1136
        %v1145 = vmul.f32 %v516, %v1136
        %v1146 = vmul.f32 %v430, %v1136
        %v1147 = vmul.f32 %v435, %v1136
        %v1148 = vmul.f32 %v521, %v1136
        %v1149 = vmul.f32 %v440, %v1136
        %v1150 = vmul.f32 %v445, %v1136
        %v1151 = vmul.f32 %v526, %v1136
        %v1152 = vmul.f32 %v450, %v1136
        %v1153 = vmul.f32 %v455, %v1136
        %v1154 = vmul.f32 %v531, %v1136
        %v1155 = vmul.f32 %v786, %v1136
        %v1156 = vmul.f32 %v791, %v1136
        %v1157 = vmul.f32 %v832, %v1136
        %v1158 = vmul.f32 %v1085, %v1136
        %v1159 = vmul.f32 %v1090, %v1136
        %v1160 = vmul.f32 %v1131, %v1136
        %v1185 = vrot.slane %v1137, 1
        %v1186 = vrot.slane %v1138, 1
        %v1187 = vsel %vm585, %v1185, %v1186
        %v1188 = vrot.slane %v1139, 1
        %v1189 = vsel %vm585, %v1186, %v1188
        %v1190 = vrot.slane %v1140, 1
        %v1191 = vrot.slane %v1141, 1
        %v1192 = vsel %vm585, %v1190, %v1191
        %v1193 = vrot.slane %v1142, 1
        %v1194 = vsel %vm585, %v1191, %v1193
        %v1195 = vrot.slane %v1143, 1
        %v1196 = vrot.slane %v1144, 1
        %v1197 = vsel %vm585, %v1195, %v1196
        %v1198 = vrot.slane %v1145, 1
        %v1199 = vsel %vm585, %v1196, %v1198
        %v1200 = vrot.slane %v1146, 1
        %v1201 = vrot.slane %v1147, 1
        %v1202 = vsel %vm585, %v1200, %v1201
        %v1203 = vrot.slane %v1148, 1
        %v1204 = vsel %vm585, %v1201, %v1203
        %v1205 = vrot.slane %v1149, 1
        %v1206 = vrot.slane %v1150, 1
        %v1207 = vsel %vm585, %v1205, %v1206
        %v1208 = vrot.slane %v1151, 1
        %v1209 = vsel %vm585, %v1206, %v1208
        %v1210 = vrot.slane %v1152, 1
        %v1211 = vrot.slane %v1153, 1
        %v1212 = vsel %vm585, %v1210, %v1211
        %v1213 = vrot.slane %v1154, 1
        %v1214 = vsel %vm585, %v1211, %v1213
        %v1215 = vrot.slane %v1155, 1
        %v1216 = vrot.slane %v1156, 1
        %v1217 = vsel %vm585, %v1215, %v1216
        %v1218 = vrot.slane %v1157, 1
        %v1219 = vsel %vm585, %v1216, %v1218
        %v1220 = vrot.slane %v1158, 1
        %v1221 = vrot.slane %v1159, 1
        %v1222 = vsel %vm585, %v1220, %v1221
        %v1223 = vrot.slane %v1160, 1
        %v1224 = vsel %vm585, %v1221, %v1223
        %v1241 = vadd.f32 %v1112, %v1187
        %v1242 = vadd.f32 %v1113, %v1189
        %v1243 = vadd.f32 %v1114, %v1192
        %v1244 = vadd.f32 %v1115, %v1194
        %v1245 = vadd.f32 %v1116, %v1197
        %v1246 = vadd.f32 %v1117, %v1199
        %v1247 = vadd.f32 %v1118, %v1202
        %v1248 = vadd.f32 %v1119, %v1204
        %v1249 = vadd.f32 %v1120, %v1207
        %v1250 = vadd.f32 %v1121, %v1209
        %v1251 = vadd.f32 %v1122, %v1212
        %v1252 = vadd.f32 %v1123, %v1214
        %v1253 = vadd.f32 %v1124, %v1217
        %v1254 = vadd.f32 %v1125, %v1219
        %v1255 = vadd.f32 %v1126, %v1222
        %v1256 = vadd.f32 %v1127, %v1224
        %v1257 = vlaneseq
        %v1258 = vshrl.u32 %v1257, 7
        %v1259 = vsub.s32 0, %v1258
        %v1260 = vrot.slane %v376, %v1259
        %v1261 = vmul.f32 %v400, %v1260
        %v1262 = vmul.f32 %v405, %v1260
        %v1263 = vmul.f32 %v506, %v1260
        %v1264 = vmul.f32 %v410, %v1260
        %v1265 = vmul.f32 %v415, %v1260
        %v1266 = vmul.f32 %v511, %v1260
        %v1267 = vmul.f32 %v420, %v1260
        %v1268 = vmul.f32 %v425, %v1260
        %v1269 = vmul.f32 %v516, %v1260
        %v1270 = vmul.f32 %v430, %v1260
        %v1271 = vmul.f32 %v435, %v1260
        %v1272 = vmul.f32 %v521, %v1260
        %v1273 = vmul.f32 %v440, %v1260
        %v1274 = vmul.f32 %v445, %v1260
        %v1275 = vmul.f32 %v526, %v1260
        %v1276 = vmul.f32 %v450, %v1260
        %v1277 = vmul.f32 %v455, %v1260
        %v1278 = vmul.f32 %v531, %v1260
        %v1279 = vmul.f32 %v786, %v1260
        %v1280 = vmul.f32 %v791, %v1260
        %v1281 = vmul.f32 %v832, %v1260
        %v1282 = vmul.f32 %v1085, %v1260
        %v1283 = vmul.f32 %v1090, %v1260
        %v1284 = vmul.f32 %v1131, %v1260
        %v1309 = vrot.slane %v1261, 2
        %v1310 = vrot.slane %v1262, 2
        %v1311 = vsel %vm710, %v1309, %v1310
        %v1312 = vrot.slane %v1263, 2
        %v1313 = vsel %vm710, %v1310, %v1312
        %v1314 = vrot.slane %v1264, 2
        %v1315 = vrot.slane %v1265, 2
        %v1316 = vsel %vm710, %v1314, %v1315
        %v1317 = vrot.slane %v1266, 2
        %v1318 = vsel %vm710, %v1315, %v1317
        %v1319 = vrot.slane %v1267, 2
        %v1320 = vrot.slane %v1268, 2
        %v1321 = vsel %vm710, %v1319, %v1320
        %v1322 = vrot.slane %v1269, 2
        %v1323 = vsel %vm710, %v1320, %v1322
        %v1324 = vrot.slane %v1270, 2
        %v1325 = vrot.slane %v1271, 2
        %v1326 = vsel %vm710, %v1324, %v1325
        %v1327 = vrot.slane %v1272, 2
        %v1328 = vsel %vm710, %v1325, %v1327
        %v1329 = vrot.slane %v1273, 2
        %v1330 = vrot.slane %v1274, 2
        %v1331 = vsel %vm710, %v1329, %v1330
        %v1332 = vrot.slane %v1275, 2
        %v1333 = vsel %vm710, %v1330, %v1332
        %v1334 = vrot.slane %v1276, 2
        %v1335 = vrot.slane %v1277, 2
        %v1336 = vsel %vm710, %v1334, %v1335
        %v1337 = vrot.slane %v1278, 2
        %v1338 = vsel %vm710, %v1335, %v1337
        %v1339 = vrot.slane %v1279, 2
        %v1340 = vrot.slane %v1280, 2
        %v1341 = vsel %vm710, %v1339, %v1340
        %v1342 = vrot.slane %v1281, 2
        %v1343 = vsel %vm710, %v1340, %v1342
        %v1344 = vrot.slane %v1282, 2
        %v1345 = vrot.slane %v1283, 2
        %v1346 = vsel %vm710, %v1344, %v1345
        %v1347 = vrot.slane %v1284, 2
        %v1348 = vsel %vm710, %v1345, %v1347
        %v1365 = vadd.f32 %v1241, %v1311
        %v1366 = vadd.f32 %v1242, %v1313
        %v1367 = vadd.f32 %v1243, %v1316
        %v1368 = vadd.f32 %v1244, %v1318
        %v1369 = vadd.f32 %v1245, %v1321
        %v1370 = vadd.f32 %v1246, %v1323
        %v1371 = vadd.f32 %v1247, %v1326
        %v1372 = vadd.f32 %v1248, %v1328
        %v1373 = vadd.f32 %v1249, %v1331
        %v1374 = vadd.f32 %v1250, %v1333
        %v1375 = vadd.f32 %v1251, %v1336
        %v1376 = vadd.f32 %v1252, %v1338
        %v1377 = vadd.f32 %v1253, %v1341
        %v1378 = vadd.f32 %v1254, %v1343
        %v1379 = vadd.f32 %v1255, %v1346
        %v1380 = vadd.f32 %v1256, %v1348
        %v1381 = vld [vmem:[%s2] sm:$0x1]
        %v1383 = vlaneseq
        %v1384 = vshrl.u32 %v1383, 7
        %v1385 = vsub.s32 0, %v1384
        %v1386 = vrot.slane %v1381, %v1385
        %v1388 = vadd.f32 %v1365, %v1386
        %v1389 = vadd.f32 %v1366, %v1386
        %v1390 = vadd.f32 %v1367, %v1386
        %v1391 = vadd.f32 %v1368, %v1386
        %v1392 = vadd.f32 %v1369, %v1386
        %v1393 = vadd.f32 %v1370, %v1386
        %v1394 = vadd.f32 %v1371, %v1386
        %v1395 = vadd.f32 %v1372, %v1386
        %v1396 = vadd.f32 %v1373, %v1386
        %v1397 = vadd.f32 %v1374, %v1386
        %v1398 = vadd.f32 %v1375, %v1386
        %v1399 = vadd.f32 %v1376, %v1386
        %v1400 = vadd.f32 %v1377, %v1386
        %v1401 = vadd.f32 %v1378, %v1386
        %v1402 = vadd.f32 %v1379, %v1386
        %v1403 = vadd.f32 %v1380, %v1386
        %v1404 = vxor.u32 %v1388, 2147483648
        %v1405 = vxor.u32 %v1389, 2147483648
        %v1406 = vxor.u32 %v1390, 2147483648
        %v1407 = vxor.u32 %v1391, 2147483648
        %v1408 = vxor.u32 %v1392, 2147483648
        %v1409 = vxor.u32 %v1393, 2147483648
        %v1410 = vxor.u32 %v1394, 2147483648
        %v1411 = vxor.u32 %v1395, 2147483648
        %v1412 = vxor.u32 %v1396, 2147483648
        %v1413 = vxor.u32 %v1397, 2147483648
        %v1414 = vxor.u32 %v1398, 2147483648
        %v1415 = vxor.u32 %v1399, 2147483648
        %v1416 = vxor.u32 %v1400, 2147483648
        %v1417 = vxor.u32 %v1401, 2147483648
        %v1418 = vxor.u32 %v1402, 2147483648
        %v1419 = vxor.u32 %v1403, 2147483648
        %v1420 = vmul.f32 %v1404, 1.442695
        %v1421 = vpow.pop %v1420
        %v1422 = vmul.f32 %v1405, 1.442695
        %v1423 = vpow.pop %v1422
        %v1424 = vmul.f32 %v1406, 1.442695
        %v1425 = vpow.pop %v1424
        %v1426 = vmul.f32 %v1407, 1.442695
        %v1427 = vpow.pop %v1426
        %v1428 = vmul.f32 %v1408, 1.442695
        %v1429 = vpow.pop %v1428
        %v1430 = vmul.f32 %v1409, 1.442695
        %v1431 = vpow.pop %v1430
        %v1432 = vmul.f32 %v1410, 1.442695
        %v1433 = vpow.pop %v1432
        %v1434 = vmul.f32 %v1411, 1.442695
        %v1435 = vpow.pop %v1434
        %v1436 = vmul.f32 %v1412, 1.442695
        %v1437 = vpow.pop %v1436
        %v1438 = vmul.f32 %v1413, 1.442695
        %v1439 = vpow.pop %v1438
        %v1440 = vmul.f32 %v1414, 1.442695
        %v1441 = vpow.pop %v1440
        %v1442 = vmul.f32 %v1415, 1.442695
        %v1443 = vpow.pop %v1442
        %v1444 = vmul.f32 %v1416, 1.442695
        %v1445 = vpow.pop %v1444
        %v1446 = vmul.f32 %v1417, 1.442695
        %v1447 = vpow.pop %v1446
        %v1448 = vmul.f32 %v1418, 1.442695
        %v1449 = vpow.pop %v1448
        %v1450 = vmul.f32 %v1419, 1.442695
        %v1451 = vpow.pop %v1450
        %v1452 = vadd.f32 %v1421, 1.0
        %v1453 = vadd.f32 %v1423, 1.0
        %v1454 = vadd.f32 %v1425, 1.0
        %v1455 = vadd.f32 %v1427, 1.0
        %v1456 = vadd.f32 %v1429, 1.0
        %v1457 = vadd.f32 %v1431, 1.0
        %v1458 = vadd.f32 %v1433, 1.0
        %v1459 = vadd.f32 %v1435, 1.0
        %v1460 = vadd.f32 %v1437, 1.0
        %v1461 = vadd.f32 %v1439, 1.0
        %v1462 = vadd.f32 %v1441, 1.0
        %v1463 = vadd.f32 %v1443, 1.0
        %v1464 = vadd.f32 %v1445, 1.0
        %v1465 = vadd.f32 %v1447, 1.0
        %v1466 = vadd.f32 %v1449, 1.0
        %v1467 = vadd.f32 %v1451, 1.0
        %v1468 = vrcp.pop %v1452
        %v1469 = vmul.f32 1.0, %v1468
        %v1470 = vrcp.pop %v1453
        %v1471 = vmul.f32 1.0, %v1470
        %v1472 = vrcp.pop %v1454
        %v1473 = vmul.f32 1.0, %v1472
        %v1474 = vrcp.pop %v1455
        %v1475 = vmul.f32 1.0, %v1474
        %v1476 = vrcp.pop %v1456
        %v1477 = vmul.f32 1.0, %v1476
        %v1478 = vrcp.pop %v1457
        %v1479 = vmul.f32 1.0, %v1478
        %v1480 = vrcp.pop %v1458
        %v1481 = vmul.f32 1.0, %v1480
        %v1482 = vrcp.pop %v1459
        %v1483 = vmul.f32 1.0, %v1482
        %v1484 = vrcp.pop %v1460
        %v1485 = vmul.f32 1.0, %v1484
        %v1486 = vrcp.pop %v1461
        %v1487 = vmul.f32 1.0, %v1486
        %v1488 = vrcp.pop %v1462
        %v1489 = vmul.f32 1.0, %v1488
        %v1490 = vrcp.pop %v1463
        %v1491 = vmul.f32 1.0, %v1490
        %v1492 = vrcp.pop %v1464
        %v1493 = vmul.f32 1.0, %v1492
        %v1494 = vrcp.pop %v1465
        %v1495 = vmul.f32 1.0, %v1494
        %v1496 = vrcp.pop %v1466
        %v1497 = vmul.f32 1.0, %v1496
        %v1498 = vrcp.pop %v1467
        %v1499 = vmul.f32 1.0, %v1498
        %v1500 = vmul.f32 %v1388, %v1469
        %v1501 = vmul.f32 %v1389, %v1471
        %v1502 = vmul.f32 %v1390, %v1473
        %v1503 = vmul.f32 %v1391, %v1475
        %v1504 = vmul.f32 %v1392, %v1477
        %v1505 = vmul.f32 %v1393, %v1479
        %v1506 = vmul.f32 %v1394, %v1481
        %v1507 = vmul.f32 %v1395, %v1483
        %v1508 = vmul.f32 %v1396, %v1485
        %v1509 = vmul.f32 %v1397, %v1487
        %v1510 = vmul.f32 %v1398, %v1489
        %v1511 = vmul.f32 %v1399, %v1491
        %v1512 = vmul.f32 %v1400, %v1493
        %v1513 = vmul.f32 %v1401, %v1495
        %v1514 = vmul.f32 %v1402, %v1497
        %v1515 = vmul.f32 %v1403, %v1499
        %v1516 = vpack.c.bf16 %v1501, %v1500
        %v1517 = vpack.c.bf16 %v1503, %v1502
        %v1518 = vpack.c.bf16 %v1505, %v1504
        %v1519 = vpack.c.bf16 %v1507, %v1506
        %v1520 = vpack.c.bf16 %v1509, %v1508
        %v1521 = vpack.c.bf16 %v1511, %v1510
        %v1522 = vpack.c.bf16 %v1513, %v1512
        %v1523 = vpack.c.bf16 %v1515, %v1514
        %v1524 = vld [vmem:[%s3] sm:$0xf]
        %v1525 = vld [vmem:[%s3 + $0x4] sm:$0xf]
        %v1526 = vld [vmem:[%s3 + $0x8] sm:$0xf]
        %v1527 = vld [vmem:[%s3 + $0xc] sm:$0xf]
        %v1528 = vld [vmem:[%s4] sm:$0x1]
        %v1530 = vlaneseq
        %v1531 = vshrl.u32 %v1530, 7
        %v1532 = vsub.s32 0, %v1531
        %v1533 = vrot.slane %v1528, %v1532
        %v1539 = vunpack.c.l.b16 %v1524
        %v1540 = vunpack.c.l.b16 %v1525
        %v1541 = vunpack.c.l.b16 %v1526
        %v1542 = vunpack.c.l.b16 %v1527
        %v1543 = vpack.c.b16 %v1540, %v1539
        %v1544 = vpack.c.b16 %v1542, %v1541
        %vm1547 = vcmask 261120
        %v1549 = vsel %vm1547, %v1516, 0
        %v1552 = vsel %vm1547, %v1517, 0
        %v1555 = vsel %vm1547, %v1518, 0
        %v1558 = vsel %vm1547, %v1519, 0
        %v1561 = vsel %vm1547, %v1520, 0
        %v1564 = vsel %vm1547, %v1521, 0
        %v1567 = vsel %vm1547, %v1522, 0
        %v1570 = vsel %vm1547, %v1523, 0
        %1572 = vmatprep.subr.bf16.mxu0 0
        %1573 = vmatpush1.bf16.msra.mxu0 0
        %1574 = vmatprep.subr.bf16.mxu0 0
        %1575 = vmatpush1.bf16.msra.mxu0 0
        %1576 = vmatprep.subr.bf16.mxu0 0
        %1577 = vmatpush1.bf16.msra.mxu0 0
        %1578 = vmatprep.subr.bf16.mxu0 0
        %1579 = vmatpush1.bf16.msra.mxu0 0
        %1580 = vmatprep.subr.bf16.mxu0 0
        %1581 = vmatpush1.bf16.msra.mxu0 0
        %1582 = vmatprep.subr.bf16.mxu0 0
        %1583 = vmatpush1.bf16.msra.mxu0 0
        %1584 = vmatprep.subr.bf16.mxu0 0
        %1585 = vmatpush1.bf16.msra.mxu0 %v1544
        %1586 = vmatprep.subr.bf16.mxu0 0
        %1587 = vmatpush1.bf16.msra.mxu0 %v1543
        %1588 = vmatprep.subr.bf16.mxu0 0
        %1589 = vmatpush2.bf16.msra.mxu0 0
        %1590 = vmatprep.subr.bf16.mxu0 0
        %1591 = vmatpush2.bf16.msra.mxu0 0
        %1592 = vmatprep.subr.bf16.mxu0 0
        %1593 = vmatpush2.bf16.msra.mxu0 0
        %1594 = vmatprep.subr.bf16.mxu0 0
        %1595 = vmatpush2.bf16.msra.mxu0 0
        %1596 = vmatprep.subr.bf16.mxu0 0
        %1597 = vmatpush2.bf16.msra.mxu0 0
        %1598 = vmatprep.subr.bf16.mxu0 0
        %1599 = vmatpush2.bf16.msra.mxu0 0
        %1600 = vmatprep.subr.bf16.mxu0 0
        %1601 = vmatpush2.bf16.msra.mxu0 0
        %1602 = vmatprep.subr.bf16.mxu0 0
        %1603 = vmatpush2.bf16.msra.mxu0 0
        %1604 = vmatprep.mubr.bf16.mxu0 0
        %1605 = vmatmul.mubr.bf16.gmra.mxu0 %v1549
        %v1606 = vpop.f32.mrf.mxu0
        %v1607 = vadd.f32 %v1533, %v1606
        %v1608 = vpop.f32.mrf.mxu0
        %v1609 = vpop.f32.mrf.mxu0
        %v1610 = vadd.f32 %v1533, %v1609
        %v1611 = vpop.f32.mrf.mxu0
        %1612 = vmatprep.mubr.bf16.mxu0 0
        %1613 = vmatmul.mubr.bf16.gmra.mxu0 %v1552
        %v1614 = vpop.f32.mrf.mxu0
        %v1615 = vadd.f32 %v1533, %v1614
        %v1616 = vpop.f32.mrf.mxu0
        %v1617 = vpop.f32.mrf.mxu0
        %v1618 = vadd.f32 %v1533, %v1617
        %v1619 = vpop.f32.mrf.mxu0
        %1620 = vmatprep.mubr.bf16.mxu0 0
        %1621 = vmatmul.mubr.bf16.gmra.mxu0 %v1555
        %v1622 = vpop.f32.mrf.mxu0
        %v1623 = vadd.f32 %v1533, %v1622
        %v1624 = vpop.f32.mrf.mxu0
        %v1625 = vpop.f32.mrf.mxu0
        %v1626 = vadd.f32 %v1533, %v1625
        %v1627 = vpop.f32.mrf.mxu0
        %1628 = vmatprep.mubr.bf16.mxu0 0
        %1629 = vmatmul.mubr.bf16.gmra.mxu0 %v1558
        %v1630 = vpop.f32.mrf.mxu0
        %v1631 = vadd.f32 %v1533, %v1630
        %v1632 = vpop.f32.mrf.mxu0
        %v1633 = vpop.f32.mrf.mxu0
        %v1634 = vadd.f32 %v1533, %v1633
        %v1635 = vpop.f32.mrf.mxu0
        %1636 = vmatprep.mubr.bf16.mxu0 0
        %1637 = vmatmul.mubr.bf16.gmra.mxu0 %v1561
        %v1638 = vpop.f32.mrf.mxu0
        %v1639 = vadd.f32 %v1533, %v1638
        %v1640 = vpop.f32.mrf.mxu0
        %v1641 = vpop.f32.mrf.mxu0
        %v1642 = vadd.f32 %v1533, %v1641
        %v1643 = vpop.f32.mrf.mxu0
        %1644 = vmatprep.mubr.bf16.mxu0 0
        %1645 = vmatmul.mubr.bf16.gmra.mxu0 %v1564
        %v1646 = vpop.f32.mrf.mxu0
        %v1647 = vadd.f32 %v1533, %v1646
        %v1648 = vpop.f32.mrf.mxu0
        %v1649 = vpop.f32.mrf.mxu0
        %v1650 = vadd.f32 %v1533, %v1649
        %v1651 = vpop.f32.mrf.mxu0
        %1652 = vmatprep.mubr.bf16.mxu0 0
        %1653 = vmatmul.mubr.bf16.gmra.mxu0 %v1567
        %v1654 = vpop.f32.mrf.mxu0
        %v1655 = vadd.f32 %v1533, %v1654
        %v1656 = vpop.f32.mrf.mxu0
        %v1657 = vpop.f32.mrf.mxu0
        %v1658 = vadd.f32 %v1533, %v1657
        %v1659 = vpop.f32.mrf.mxu0
        %1660 = vmatprep.mubr.bf16.mxu0 0
        %1661 = vmatmul.mubr.bf16.gmra.mxu0 %v1570
        %v1662 = vpop.f32.mrf.mxu0
        %v1663 = vadd.f32 %v1533, %v1662
        %v1664 = vpop.f32.mrf.mxu0
        %v1665 = vpop.f32.mrf.mxu0
        %v1666 = vadd.f32 %v1533, %v1665
        %v1667 = vpop.f32.mrf.mxu0
        %1668 = vdwg.mxu0
        %v1669 = vxor.u32 %v1607, 2147483648
        %v1670 = vxor.u32 %v1610, 2147483648
        %v1671 = vxor.u32 %v1615, 2147483648
        %v1672 = vxor.u32 %v1618, 2147483648
        %v1673 = vxor.u32 %v1623, 2147483648
        %v1674 = vxor.u32 %v1626, 2147483648
        %v1675 = vxor.u32 %v1631, 2147483648
        %v1676 = vxor.u32 %v1634, 2147483648
        %v1677 = vxor.u32 %v1639, 2147483648
        %v1678 = vxor.u32 %v1642, 2147483648
        %v1679 = vxor.u32 %v1647, 2147483648
        %v1680 = vxor.u32 %v1650, 2147483648
        %v1681 = vxor.u32 %v1655, 2147483648
        %v1682 = vxor.u32 %v1658, 2147483648
        %v1683 = vxor.u32 %v1663, 2147483648
        %v1684 = vxor.u32 %v1666, 2147483648
        %v1685 = vmul.f32 %v1669, 1.442695
        %v1686 = vpow.pop %v1685
        %v1687 = vmul.f32 %v1670, 1.442695
        %v1688 = vpow.pop %v1687
        %v1689 = vmul.f32 %v1671, 1.442695
        %v1690 = vpow.pop %v1689
        %v1691 = vmul.f32 %v1672, 1.442695
        %v1692 = vpow.pop %v1691
        %v1693 = vmul.f32 %v1673, 1.442695
        %v1694 = vpow.pop %v1693
        %v1695 = vmul.f32 %v1674, 1.442695
        %v1696 = vpow.pop %v1695
        %v1697 = vmul.f32 %v1675, 1.442695
        %v1698 = vpow.pop %v1697
        %v1699 = vmul.f32 %v1676, 1.442695
        %v1700 = vpow.pop %v1699
        %v1701 = vmul.f32 %v1677, 1.442695
        %v1702 = vpow.pop %v1701
        %v1703 = vmul.f32 %v1678, 1.442695
        %v1704 = vpow.pop %v1703
        %v1705 = vmul.f32 %v1679, 1.442695
        %v1706 = vpow.pop %v1705
        %v1707 = vmul.f32 %v1680, 1.442695
        %v1708 = vpow.pop %v1707
        %v1709 = vmul.f32 %v1681, 1.442695
        %v1710 = vpow.pop %v1709
        %v1711 = vmul.f32 %v1682, 1.442695
        %v1712 = vpow.pop %v1711
        %v1713 = vmul.f32 %v1683, 1.442695
        %v1714 = vpow.pop %v1713
        %v1715 = vmul.f32 %v1684, 1.442695
        %v1716 = vpow.pop %v1715
        %v1717 = vadd.f32 %v1686, 1.0
        %v1718 = vadd.f32 %v1688, 1.0
        %v1719 = vadd.f32 %v1690, 1.0
        %v1720 = vadd.f32 %v1692, 1.0
        %v1721 = vadd.f32 %v1694, 1.0
        %v1722 = vadd.f32 %v1696, 1.0
        %v1723 = vadd.f32 %v1698, 1.0
        %v1724 = vadd.f32 %v1700, 1.0
        %v1725 = vadd.f32 %v1702, 1.0
        %v1726 = vadd.f32 %v1704, 1.0
        %v1727 = vadd.f32 %v1706, 1.0
        %v1728 = vadd.f32 %v1708, 1.0
        %v1729 = vadd.f32 %v1710, 1.0
        %v1730 = vadd.f32 %v1712, 1.0
        %v1731 = vadd.f32 %v1714, 1.0
        %v1732 = vadd.f32 %v1716, 1.0
        %v1733 = vrcp.pop %v1717
        %v1734 = vmul.f32 1.0, %v1733
        %v1735 = vrcp.pop %v1718
        %v1736 = vmul.f32 1.0, %v1735
        %v1737 = vrcp.pop %v1719
        %v1738 = vmul.f32 1.0, %v1737
        %v1739 = vrcp.pop %v1720
        %v1740 = vmul.f32 1.0, %v1739
        %v1741 = vrcp.pop %v1721
        %v1742 = vmul.f32 1.0, %v1741
        %v1743 = vrcp.pop %v1722
        %v1744 = vmul.f32 1.0, %v1743
        %v1745 = vrcp.pop %v1723
        %v1746 = vmul.f32 1.0, %v1745
        %v1747 = vrcp.pop %v1724
        %v1748 = vmul.f32 1.0, %v1747
        %v1749 = vrcp.pop %v1725
        %v1750 = vmul.f32 1.0, %v1749
        %v1751 = vrcp.pop %v1726
        %v1752 = vmul.f32 1.0, %v1751
        %v1753 = vrcp.pop %v1727
        %v1754 = vmul.f32 1.0, %v1753
        %v1755 = vrcp.pop %v1728
        %v1756 = vmul.f32 1.0, %v1755
        %v1757 = vrcp.pop %v1729
        %v1758 = vmul.f32 1.0, %v1757
        %v1759 = vrcp.pop %v1730
        %v1760 = vmul.f32 1.0, %v1759
        %v1761 = vrcp.pop %v1731
        %v1762 = vmul.f32 1.0, %v1761
        %v1763 = vrcp.pop %v1732
        %v1764 = vmul.f32 1.0, %v1763
        %v1765 = vmul.f32 %v1607, %v1734
        %v1766 = vmul.f32 %v1610, %v1736
        %v1767 = vmul.f32 %v1615, %v1738
        %v1768 = vmul.f32 %v1618, %v1740
        %v1769 = vmul.f32 %v1623, %v1742
        %v1770 = vmul.f32 %v1626, %v1744
        %v1771 = vmul.f32 %v1631, %v1746
        %v1772 = vmul.f32 %v1634, %v1748
        %v1773 = vmul.f32 %v1639, %v1750
        %v1774 = vmul.f32 %v1642, %v1752
        %v1775 = vmul.f32 %v1647, %v1754
        %v1776 = vmul.f32 %v1650, %v1756
        %v1777 = vmul.f32 %v1655, %v1758
        %v1778 = vmul.f32 %v1658, %v1760
        %v1779 = vmul.f32 %v1663, %v1762
        %v1780 = vmul.f32 %v1666, %v1764
        %v1781 = vmax.f32 %v1765, 1e-06
        %v1782 = vmax.f32 %v1766, 1e-06
        %v1783 = vmax.f32 %v1767, 1e-06
        %v1784 = vmax.f32 %v1768, 1e-06
        %v1785 = vmax.f32 %v1769, 1e-06
        %v1786 = vmax.f32 %v1770, 1e-06
        %v1787 = vmax.f32 %v1771, 1e-06
        %v1788 = vmax.f32 %v1772, 1e-06
        %v1789 = vmax.f32 %v1773, 1e-06
        %v1790 = vmax.f32 %v1774, 1e-06
        %v1791 = vmax.f32 %v1775, 1e-06
        %v1792 = vmax.f32 %v1776, 1e-06
        %v1793 = vmax.f32 %v1777, 1e-06
        %v1794 = vmax.f32 %v1778, 1e-06
        %v1795 = vmax.f32 %v1779, 1e-06
        %v1796 = vmax.f32 %v1780, 1e-06
        %v1797 = vmul.f32 %v1781, %v1781
        %v1798 = vmul.f32 %v1782, %v1782
        %v1799 = vmul.f32 %v1783, %v1783
        %v1800 = vmul.f32 %v1784, %v1784
        %v1801 = vmul.f32 %v1785, %v1785
        %v1802 = vmul.f32 %v1786, %v1786
        %v1803 = vmul.f32 %v1787, %v1787
        %v1804 = vmul.f32 %v1788, %v1788
        %v1805 = vmul.f32 %v1789, %v1789
        %v1806 = vmul.f32 %v1790, %v1790
        %v1807 = vmul.f32 %v1791, %v1791
        %v1808 = vmul.f32 %v1792, %v1792
        %v1809 = vmul.f32 %v1793, %v1793
        %v1810 = vmul.f32 %v1794, %v1794
        %v1811 = vmul.f32 %v1795, %v1795
        %v1812 = vmul.f32 %v1796, %v1796
        %v1813 = vmul.f32 %v1797, %v1781
        %v1814 = vmul.f32 %v1798, %v1782
        %v1815 = vmul.f32 %v1799, %v1783
        %v1816 = vmul.f32 %v1800, %v1784
        %v1817 = vmul.f32 %v1801, %v1785
        %v1818 = vmul.f32 %v1802, %v1786
        %v1819 = vmul.f32 %v1803, %v1787
        %v1820 = vmul.f32 %v1804, %v1788
        %v1821 = vmul.f32 %v1805, %v1789
        %v1822 = vmul.f32 %v1806, %v1790
        %v1823 = vmul.f32 %v1807, %v1791
        %v1824 = vmul.f32 %v1808, %v1792
        %v1825 = vmul.f32 %v1809, %v1793
        %v1826 = vmul.f32 %v1810, %v1794
        %v1827 = vmul.f32 %v1811, %v1795
        %v1828 = vmul.f32 %v1812, %v1796
        %v1829 = vadd.f32 %v1813, %v1814
        %v1830 = vadd.f32 %v1829, %v1815
        %v1831 = vadd.f32 %v1830, %v1816
        %v1832 = vadd.f32 %v1831, %v1817
        %v1833 = vadd.f32 %v1832, %v1818
        %v1834 = vadd.f32 %v1833, %v1819
        %v1835 = vadd.f32 %v1834, %v1820
        %v1836 = vadd.f32 %v1835, %v1821
        %v1837 = vadd.f32 %v1836, %v1822
        %v1838 = vadd.f32 %v1837, %v1823
        %v1839 = vadd.f32 %v1838, %v1824
        %v1840 = vadd.f32 %v1839, %v1825
        %v1841 = vadd.f32 %v1840, %v1826
        %v1842 = vadd.f32 %v1841, %v1827
        %v1843 = vadd.f32 %v1842, %v1828
        %v1844 = vrot.slane %v1843, 4
        %v1845 = vadd.f32 %v1843, %v1844
        %v1846 = vrot.slane %v1845, 2
        %v1847 = vadd.f32 %v1845, %v1846
        %v1848 = vrot.slane %v1847, 1
        %v1849 = vadd.f32 %v1847, %v1848
        %v1850 = vld [vmem:[%s321] sm:$0x1]
        %v1851 = vadd.f32 %v1850, %v1849
        %1852 = vst [vmem:[%s321] sm:$0x1] %v1851
        %p1853 = scmp.eq.s32.totalorder %s29, 1
        // Predicated region
        $region53: #{a_call__.1} parent=47 // pred_check
          %p1854 = pneg %p1853
        $region54: #{a_call__.1} parent=47 // pred_check_branch
          %1856 = sbr.rel (%p1854) target = $region56
        $region55: #{a_call__.1} parent=47 // pred_region
          %v1857 = vld [vmem:[%s321] sm:$0x1]
          %v1858 = vmul.f32 %v1857, 0.00390625
          %v1859 = vlog2.pop %v1858
          %v1860 = vmul.f32 %v1859, 0.6931472
          %v1861 = vmul.f32 %v1860, 0.33333334
          %v1862 = vmul.f32 %v1861, 1.442695
          %v1863 = vpow.pop %v1862
          %1864 = vst [vmem:[%s321] sm:$0x1] %v1863
          %v1865 = vld [vmem:[%s5] sm:$0x1]
          %v1866 = vmul.f32 %v1863, %v1865
          %vm1867 = vcmask 1040384
          %v1868 = vsel %vm1867, %v1866, 0.0
          %1869 = vadd.xlane.f32.xlu0 %v1868
          %v1870 = vpop.xlane.xlu0 %1869
          %s1871 = sld [smem:[#allocation2]]
          %v1872 = vstv %s1871
          %v1873 = vadd.f32 %v1870, %v1872
          %vm1874 = vcmask 0
          %1875 = vst.msk [vmem:[%s338] sm:$0x1] %vm1874, %v1873
        $region56: #{a_call__.1} parent=47 // pred_fallthru
          _
        %s1876 = sand.u32 %s198, 1
        %s1877 = scalar_lea.sflag [#allocation4], %s1876
        %s1878 = sand.u32 %s198, 1
        %s1879 = scalar_lea.vmem [#allocation3], %s1878
        %p1880 = scmp.lt.s32.totalorder %s28, 1
        %s1881 = scalar_select %p1880, %s28, 1
        %s1882 = scalar_lea.vmem %s8, %s1881
        // Predicated region
        $region57: #{a_call__.1} parent=47 // pred_check
          %p1883 = pneg %p208
        $region58: #{a_call__.1} parent=47 // pred_check_branch
          %1885 = sbr.rel (%p1883) target = $region60
        $region59: #{a_call__.1} parent=47 // pred_region
          %s1887 = ssub.s32 16, 16
          %1888 = vsyncadd %s1877, %s1887
          %s1889 = smul.addr %s28, 16
          %s1890 = scalar_lea.hbm %s7, %s1889
          %s1892 = sshll.u32 %s1879, 4
          %s1893 = int_to_ptr.vmem [resolvable:$true] %s1892
          %1895 = dma.vmem_to_hbm [thread:$0]  %s1893, 16, %s1890, %s1877
        $region60: #{a_call__.1} parent=47 // pred_fallthru
          _
        // Predicated region
        $region61: #{a_call__.1} parent=47 // pred_check
          %p1896 = pneg %p234
        $region62: #{a_call__.1} parent=47 // pred_check_branch
          %1898 = sbr.rel (%p1896) target = $region64
        $region63: #{a_call__.1} parent=47 // pred_region
          _
        $region64: #{a_call__.1} parent=47 // pred_fallthru
          _
      $region48: #{a_call__.1} parent=5 // pred_fallthru
        _
      %p1899 = scmp.le.s32.totalorder 2, %s19
      // Predicated region
      $region65: #{a_call__.1} parent=5 // pred_check
        %p1900 = pneg %p1899
      $region66: #{a_call__.1} parent=5 // pred_check_branch
        %1902 = sbr.rel (%p1900) target = $region68
      $region67: #{a_call__.1} parent=5 // pred_region
        %s1903 = ssub.s32 %s19, 2
        // Predicated region
        $region69: #{a_call__.1} parent=67 // pred_check
          %p1904 = pneg %p214
        $region70: #{a_call__.1} parent=67 // pred_check_branch
          %1906 = sbr.rel (%p1904) target = $region72
        $region71: #{a_call__.1} parent=67 // pred_region
          %s1907 = sand.u32 %s199, 1
          %s1908 = scalar_lea.sflag [#allocation4], %s1907
          %s1909 = sand.u32 %s199, 1
          %s1910 = scalar_lea.vmem [#allocation3], %s1909
          %1911 = dma.done %s1908, 16
        $region72: #{a_call__.1} parent=67 // pred_fallthru
          _
        // Predicated region
        $region73: #{a_call__.1} parent=67 // pred_check
          %p1912 = pneg %p240
        $region74: #{a_call__.1} parent=67 // pred_check_branch
          %1914 = sbr.rel (%p1912) target = $region76
        $region75: #{a_call__.1} parent=67 // pred_region
          %p1915 = scmp.lt.s32.totalorder %s30, 1
          %s1916 = scalar_select %p1915, %s30, 1
          %s1917 = scalar_lea.vmem %s8, %s1916
        $region76: #{a_call__.1} parent=67 // pred_fallthru
          _
      $region68: #{a_call__.1} parent=5 // pred_fallthru
        _
    $region6: #{a_call__.1} parent=1 // loop_footer
      %s23 = sadd.s32 1, %s19
    $region7: #{a_call__.1} parent=1 // loop_footer_branch
      %18 = sbr.rel target = $region3
    $region8: #{a_call__.1} parent=1 // loop_exit
      _
    %1918 = vsyncpa [#allocation4], 1
    %s1919 = scalar_lea.sflag [#allocation4], 1
    %1920 = vsyncpa %s1919, 1

</llo_original>
